<compile_context>
chip_gen: v5e
topology: v5e:2x2
jax: 0.10.0
libtpu: 0.0.40
codegen_flags: <defaults>
</compile_context>

<pallas_src>
import functools
import math

import jax
import jax.numpy as jnp
from jax.experimental import pallas as pl
from jax.experimental.pallas import tpu as pltpu

MASK_BIAS = -1e9  # finite large-negative additive bias (NaN-safe for fully-masked rows)


# ----------------------------- fused encoder-stack kernel -----------------------------

def _roberta_stack_kernel(
    # inputs
    emb_ref,      # (Bb, S, H)  pre-LayerNorm embedding sums (f32)
    mask_ref,     # (Bb, 1, S)  additive attention bias (0 / MASK_BIAS, f32)
    eg_ref,       # (1, H)      embedding LayerNorm gamma
    eb_ref,       # (1, H)      embedding LayerNorm beta
    wqkv_ref,     # (1, H, 3H)  fused Q|K|V projection weight (bf16)
    bqkv_ref,     # (1, 1, 3H)
    wo_ref,       # (1, H, H)   attention output projection (bf16)
    bo_ref,       # (1, 1, H)
    ln1g_ref,     # (1, 1, H)
    ln1b_ref,     # (1, 1, H)
    w1_ref,       # (1, H, I)   FFN up-projection (bf16)
    b1_ref,       # (1, 1, I)
    w2_ref,       # (1, I, H)   FFN down-projection (bf16)
    b2_ref,       # (1, 1, H)
    ln2g_ref,     # (1, 1, H)
    ln2b_ref,     # (1, 1, H)
    # outputs
    o_ref,        # (Bb, 1, H)  CLS rows only
    # scratch
    h_scr,        # VMEM (Bb*S, H)  f32 hidden state, resident across the layer axis
    qkv_scr,      # VMEM (Bb*S, 3H) bf16 fused QKV activations
    ctx_scr,      # VMEM (Bb*S, H)  bf16 per-head contexts (contiguous -> one wo matmul)
    *, batch_block, seq_len, num_heads, head_dim, eps, ffn_chunk):
  layer = pl.program_id(1)
  Bb, S = batch_block, seq_len
  BS, H = h_scr.shape
  I = w1_ref.shape[-1]
  scale = 1.0 / math.sqrt(head_dim)
  inv_sqrt2 = 1.0 / math.sqrt(2.0)

  def layernorm(x, gamma, beta):
    mu = jnp.mean(x, axis=-1, keepdims=True)
    var = jnp.mean(jnp.square(x - mu), axis=-1, keepdims=True)
    return (x - mu) * jax.lax.rsqrt(var + eps) * gamma + beta

  # ---- layer 0 of this batch block: embedding LayerNorm (no residual, no zeros) ----
  @pl.when(layer == 0)
  def _():
    x = emb_ref[...].reshape(BS, H)
    h_scr[...] = layernorm(x, eg_ref[...], eb_ref[...])

  h = h_scr[...]                                   # (BS, H) f32, layer carry
  h_bf = h.astype(jnp.bfloat16)                    # single MXU-feed staging cast

  # ---- fused QKV projection: one bf16 MXU matmul over all Bb*S rows ----
  qkv = jnp.dot(h_bf, wqkv_ref[0], preferred_element_type=jnp.float32)
  qkv_scr[...] = (qkv + bqkv_ref[0]).astype(jnp.bfloat16)

  # ---- attention: per (row, head) scores/softmax/context. Contexts land contiguously in
  #      ctx_scr so the output projection is ONE full-K matmul after the loop. ----
  # TODO(synk): at RoBERTa-base sizes, process heads in 128-lane groups / fori_loop to
  # bound trace size and keep lane-aligned head slices.
  for b in range(Bb):
    r0 = b * S
    bias_b = mask_ref[b]                           # (1, S) f32
    for hd in range(num_heads):
      c = hd * head_dim
      q = qkv_scr[r0:r0 + S, c:c + head_dim]       # (S, dH) bf16
      k = qkv_scr[r0:r0 + S, H + c:H + c + head_dim]
      v = qkv_scr[r0:r0 + S, 2 * H + c:2 * H + c + head_dim]
      # q @ k^T via dot_general contracting last dims (no explicit transpose), f32 acc
      s = jax.lax.dot_general(q, k, (((1,), (1,)), ((), ())),
                              preferred_element_type=jnp.float32)
      s = s * scale + bias_b
      s = s - jnp.max(s, axis=-1, keepdims=True)
      p = jnp.exp(s)
      p = p * pl.reciprocal(jnp.sum(p, axis=-1, keepdims=True), approx=True)
      ctx = jnp.dot(p.astype(jnp.bfloat16), v, preferred_element_type=jnp.float32)
      ctx_scr[r0:r0 + S, c:c + head_dim] = ctx.astype(jnp.bfloat16)

  # ---- single full-K output projection; residual + LayerNorm fused epilogue ----
  attn = jnp.dot(ctx_scr[...], wo_ref[0], preferred_element_type=jnp.float32) + bo_ref[0]
  h1 = layernorm(attn + h, ln1g_ref[0], ln1b_ref[0])

  # ---- FFN (exact erf GELU), chunked over I to bound the (Bb*S, I) intermediate ----
  # TODO(synk): for RoBERTa-base on v7x, also K-tile the w1/w2 weight blocks (extra grid
  # axis) so double-buffered layer weights fit the 64 MiB physical VMEM.
  h1_bf = h1.astype(jnp.bfloat16)
  ffo = jnp.zeros((BS, H), jnp.float32)
  for c0 in range(0, I, ffn_chunk):
    ff = jnp.dot(h1_bf, w1_ref[0, :, c0:c0 + ffn_chunk],
                 preferred_element_type=jnp.float32) + b1_ref[0, :, c0:c0 + ffn_chunk]
    ff = 0.5 * ff * (1.0 + jax.lax.erf(ff * inv_sqrt2))
    ffo = ffo + jnp.dot(ff.astype(jnp.bfloat16), w2_ref[0, c0:c0 + ffn_chunk, :],
                        preferred_element_type=jnp.float32)
  h2 = layernorm(ffo + b2_ref[0] + h1, ln2g_ref[0], ln2b_ref[0])
  h_scr[...] = h2

  # ---- last layer: write ONLY the CLS row back to HBM ----
  @pl.when(layer == pl.num_programs(1) - 1)
  def _():
    o_ref[...] = h2.reshape(Bb, S, H)[:, :1, :].astype(o_ref.dtype)


# ----------------------------- RoBERTa model (synthetic params) -----------------------------

CONFIG = dict(vocab_size=100, hidden=32, heads=2, layers=2, intermediate=128,
              max_pos=32, type_vocab=1, pad_idx=1, ln_eps=1e-5)


def init_roberta_params(key, cfg):
  H, I, L = cfg["hidden"], cfg["intermediate"], cfg["layers"]
  wdt = jnp.bfloat16    # MXU weight storage dtype (f32 accumulation inside the kernel)
  k_word, k_pos, k_type, k_qkv, k_wo, k_w1, k_w2 = jax.random.split(key, 7)

  def w(k, shape, dtype=jnp.float32):
    return (0.02 * jax.random.normal(k, shape)).astype(dtype)

  return {
      "word_emb": w(k_word, (cfg["vocab_size"], H)),
      "pos_emb": w(k_pos, (cfg["max_pos"], H)),
      "type_emb": w(k_type, (cfg["type_vocab"], H)),
      "emb_ln_g": jnp.ones((1, H), jnp.float32),
      "emb_ln_b": jnp.zeros((1, H), jnp.float32),
      # per-layer weights stacked on a leading layer axis (grid axis 1 indexes it)
      "wqkv": w(k_qkv, (L, H, 3 * H), wdt),
      "bqkv": jnp.zeros((L, 1, 3 * H), jnp.float32),
      "wo": w(k_wo, (L, H, H), wdt),
      "bo": jnp.zeros((L, 1, H), jnp.float32),
      "ln1_g": jnp.ones((L, 1, H), jnp.float32),
      "ln1_b": jnp.zeros((L, 1, H), jnp.float32),
      "w1": w(k_w1, (L, H, I), wdt),
      "b1": jnp.zeros((L, 1, I), jnp.float32),
      "w2": w(k_w2, (L, I, H), wdt),
      "b2": jnp.zeros((L, 1, H), jnp.float32),
      "ln2_g": jnp.ones((L, 1, H), jnp.float32),
      "ln2_b": jnp.zeros((L, 1, H), jnp.float32),
  }


def _vmem_limit_bytes(Bb, S, H, I, ffn_chunk):
  bf, f32 = 2, 4
  weights = (3 * H * H + H * H + 2 * H * I) * bf + (3 * H + 8 * H + I) * f32
  io_blocks = Bb * S * (H + 1) * f32 + Bb * H * f32
  scratch = Bb * S * (H * f32 + 4 * H * bf)
  temps = 2 * Bb * S * max(3 * H, ffn_chunk) * f32
  need = 2 * (weights + io_blocks) + scratch + temps + (2 << 20)
  # clamp into a range that is valid on v5e/v6e (128 MiB phys) and v7x (64 MiB phys)
  return int(min(max(need, 32 << 20), 64 << 20))


def roberta_cls_features(params, cfg, input_ids, attention_mask):
  """Returns CLS-token features (B, H); the whole encoder stack is ONE pallas_call."""
  B, S = input_ids.shape
  H, nH, L, I = cfg["hidden"], cfg["heads"], cfg["layers"], cfg["intermediate"]
  dH = H // nH
  assert cfg["max_pos"] > S + cfg["pad_idx"], "pos_emb too small for this sequence length"

  # --- embeddings: gathers + RoBERTa position ids are JAX glue feeding the kernel ---
  mask_i = attention_mask.astype(jnp.int32)
  positions = jnp.cumsum(mask_i, axis=1) * mask_i + cfg["pad_idx"]
  emb = (jnp.take(params["word_emb"], input_ids, axis=0)
         + jnp.take(params["pos_emb"], positions, axis=0)
         + params["type_emb"][0][None, None, :]).astype(jnp.float32)      # (B, S, H)
  mask_bias = ((1.0 - attention_mask.astype(jnp.float32)) * MASK_BIAS)[:, None, :]

  # Batch tiling: Bb rows per grid step amortize per-layer weight DMA; keep >=2 blocks
  # on the parallel axis so both v7x TensorCores get work.
  Bb = max(1, min(8, B // 2))
  B_pad = ((B + Bb - 1) // Bb) * Bb
  if B_pad != B:
    pad = B_pad - B
    emb = jnp.concatenate([emb, jnp.zeros((pad, S, H), emb.dtype)], axis=0)
    mask_bias = jnp.concatenate(
        [mask_bias, jnp.full((pad, 1, S), MASK_BIAS, mask_bias.dtype)], axis=0)

  ffn_chunk = min(I, 512)

  def _wspec(d1, d2):      # per-layer param: leading layer axis indexed by grid axis 1
    return pl.BlockSpec((1, d1, d2), lambda b, l: (l, 0, 0))

  kernel = functools.partial(_roberta_stack_kernel,
                             batch_block=Bb, seq_len=S, num_heads=nH, head_dim=dH,
                             eps=cfg["ln_eps"], ffn_chunk=ffn_chunk)

  out = pl.pallas_call(
      kernel,
      out_shape=jax.ShapeDtypeStruct((B_pad, 1, H), jnp.float32),
      grid=(B_pad // Bb, L),
      in_specs=[
          pl.BlockSpec((Bb, S, H), lambda b, l: (b, 0, 0)),   # emb
          pl.BlockSpec((Bb, 1, S), lambda b, l: (b, 0, 0)),   # additive mask bias
          pl.BlockSpec((1, H), lambda b, l: (0, 0)),          # emb LN gamma
          pl.BlockSpec((1, H), lambda b, l: (0, 0)),          # emb LN beta
          _wspec(H, 3 * H),   # wqkv
          _wspec(1, 3 * H),   # bqkv
          _wspec(H, H),       # wo
          _wspec(1, H),       # bo
          _wspec(1, H),       # ln1 gamma
          _wspec(1, H),       # ln1 beta
          _wspec(H, I),       # w1
          _wspec(1, I),       # b1
          _wspec(I, H),       # w2
          _wspec(1, H),       # b2
          _wspec(1, H),       # ln2 gamma
          _wspec(1, H),       # ln2 beta
      ],
      out_specs=pl.BlockSpec((Bb, 1, H), lambda b, l: (b, 0, 0)),
      scratch_shapes=[
          pltpu.VMEM((Bb * S, H), jnp.float32),       # hidden state, resident across layers
          pltpu.VMEM((Bb * S, 3 * H), jnp.bfloat16),  # fused QKV activations (bf16)
          pltpu.VMEM((Bb * S, H), jnp.bfloat16),      # contiguous per-head contexts
      ],
      compiler_params=pltpu.CompilerParams(
          dimension_semantics=("parallel", "arbitrary"),
          vmem_limit_bytes=_vmem_limit_bytes(Bb, S, H, I, ffn_chunk)),
  )(emb, mask_bias,
    params["emb_ln_g"], params["emb_ln_b"],
    params["wqkv"], params["bqkv"], params["wo"], params["bo"],
    params["ln1_g"], params["ln1_b"],
    params["w1"], params["b1"], params["w2"], params["b2"],
    params["ln2_g"], params["ln2_b"])

  return out[:B, 0, :]


def shared_transformer_backbone(params, cfg, x: dict):
  """Mirrors SharedTransformerBackbone.forward: run the base model on every field, take
  the CLS token (last_hidden_state[:, 0, :]) and concatenate on dim 1. All fields are
  folded into one batch so the backbone runs as a SINGLE pallas_call."""
  fields = list(x.keys())
  S_max = max(int(x[k]["input_ids"].shape[1]) for k in fields)
  ids, masks = [], []
  for k in fields:
    i, m = x[k]["input_ids"], x[k]["attention_mask"]
    pad = S_max - i.shape[1]
    if pad:   # padding is masked out, so per-field outputs are unchanged
      i = jnp.pad(i, ((0, 0), (0, pad)), constant_values=cfg["pad_idx"])
      m = jnp.pad(m, ((0, 0), (0, pad)), constant_values=0)
    ids.append(i)
    masks.append(m)
  ids = jnp.concatenate(ids, axis=0)          # (F*B, S)
  masks = jnp.concatenate(masks, axis=0)

  fwd = jax.jit(lambda p, i, m: roberta_cls_features(p, cfg, i, m))
  cls = fwd(params, ids, masks)               # (F*B, H)

  B = int(x[fields[0]]["input_ids"].shape[0])
  feats = [cls[i * B:(i + 1) * B] for i in range(len(fields))]
  return jnp.concatenate(feats, axis=1)


# ----------------------------- pure-JAX reference (for validation) -----------------------------

def roberta_reference_cls(params, cfg, input_ids, attention_mask):
  H, nH, L = cfg["hidden"], cfg["heads"], cfg["layers"]
  dH = H // nH
  mask_i = attention_mask.astype(jnp.int32)
  positions = jnp.cumsum(mask_i, axis=1) * mask_i + cfg["pad_idx"]
  x = (jnp.take(params["word_emb"], input_ids, axis=0)
       + jnp.take(params["pos_emb"], positions, axis=0)
       + params["type_emb"][0][None, None, :]).astype(jnp.float32)

  def ln(t, g, b):
    mu = t.mean(-1, keepdims=True)
    var = ((t - mu) ** 2).mean(-1, keepdims=True)
    return (t - mu) / jnp.sqrt(var + cfg["ln_eps"]) * g + b

  x = ln(x, params["emb_ln_g"][0], params["emb_ln_b"][0])
  bias = ((1.0 - attention_mask.astype(jnp.float32)) * MASK_BIAS)[:, None, None, :]
  B, S, _ = x.shape
  for l in range(L):
    qkv = x @ params["wqkv"][l].astype(jnp.float32) + params["bqkv"][l]
    q, k, v = jnp.split(qkv, 3, axis=-1)
    heads = lambda t: t.reshape(B, S, nH, dH).transpose(0, 2, 1, 3)
    q, k, v = heads(q), heads(k), heads(v)
    s = jnp.einsum("bhqd,bhkd->bhqk", q, k) / math.sqrt(dH) + bias
    p = jax.nn.softmax(s, axis=-1)
    ctx = jnp.einsum("bhqk,bhkd->bhqd", p, v).transpose(0, 2, 1, 3).reshape(B, S, H)
    attn = ctx @ params["wo"][l].astype(jnp.float32) + params["bo"][l]
    x = ln(attn + x, params["ln1_g"][l], params["ln1_b"][l])
    ff = x @ params["w1"][l].astype(jnp.float32) + params["b1"][l]
    ff = 0.5 * ff * (1.0 + jax.lax.erf(ff / math.sqrt(2.0)))
    ff = ff @ params["w2"][l].astype(jnp.float32) + params["b2"][l]
    x = ln(ff + x, params["ln2_g"][l], params["ln2_b"][l])
  return x[:, 0, :]


# ----------------------------- main -----------------------------

if __name__ == "__main__":
  cfg = CONFIG
  key = jax.random.PRNGKey(0)
  pkey, k1, k2 = jax.random.split(key, 3)
  params = init_roberta_params(pkey, cfg)

  B, S = 2, 8
  x = {
      "title": {
          "input_ids": jax.random.randint(k1, (B, S), 3, cfg["vocab_size"], dtype=jnp.int32),
          "attention_mask": jnp.ones((B, S), jnp.int32),
      },
      "body": {
          "input_ids": jax.random.randint(k2, (B, S), 3, cfg["vocab_size"], dtype=jnp.int32),
          "attention_mask": jnp.ones((B, S), jnp.int32),
      },
  }

  out = shared_transformer_backbone(params, cfg, x)
  out = jax.block_until_ready(out)
  assert out.shape == (B, len(x) * cfg["hidden"]), out.shape
  assert out.dtype == jnp.float32

  ref = jnp.concatenate(
      [roberta_reference_cls(params, cfg, v["input_ids"], v["attention_mask"])
       for v in x.values()], axis=1)
  max_err = float(jnp.max(jnp.abs(out - ref)))
  assert max_err < 1e-1, f"kernel vs reference max abs error {max_err}"

  print("KERNEL_OK")
</pallas_src>

<mosaic_0001>
module attributes {stable_mosaic.version = 11 : i64} {
  func.func @_roberta_stack_kernel(%arg0: i32, %arg1: i32, %arg2: memref<2x8x32xf32, #tpu.memory_space<vmem>>, %arg3: memref<2x1x8xf32, #tpu.memory_space<vmem>>, %arg4: memref<1x32xf32, #tpu.memory_space<vmem>>, %arg5: memref<1x32xf32, #tpu.memory_space<vmem>>, %arg6: memref<1x32x96xbf16, #tpu.memory_space<vmem>>, %arg7: memref<1x1x96xf32, #tpu.memory_space<vmem>>, %arg8: memref<1x32x32xbf16, #tpu.memory_space<vmem>>, %arg9: memref<1x1x32xf32, #tpu.memory_space<vmem>>, %arg10: memref<1x1x32xf32, #tpu.memory_space<vmem>>, %arg11: memref<1x1x32xf32, #tpu.memory_space<vmem>>, %arg12: memref<1x32x128xbf16, #tpu.memory_space<vmem>>, %arg13: memref<1x1x128xf32, #tpu.memory_space<vmem>>, %arg14: memref<1x128x32xbf16, #tpu.memory_space<vmem>>, %arg15: memref<1x1x32xf32, #tpu.memory_space<vmem>>, %arg16: memref<1x1x32xf32, #tpu.memory_space<vmem>>, %arg17: memref<1x1x32xf32, #tpu.memory_space<vmem>>, %arg18: memref<2x1x32xf32, #tpu.memory_space<vmem>>, %arg19: memref<16x32xf32, #tpu.memory_space<vmem>>, %arg20: memref<16x96xbf16, #tpu.memory_space<vmem>>, %arg21: memref<16x32xbf16, #tpu.memory_space<vmem>>) attributes {dimension_semantics = [#tpu.dimension_semantics<parallel>, #tpu.dimension_semantics<arbitrary>], iteration_bounds = array<i64: 2, 2>, scalar_prefetch = 0 : i64, scratch_operands = 3 : i64, tpu.core_type = #tpu.core_type<tc>, window_params = [{transform_indices = @transform_0, window_bounds = array<i64: 2, 8, 32>}, {transform_indices = @transform_1, window_bounds = array<i64: 2, 1, 8>}, {pipeline_mode = #tpu.pipeline_mode<synchronous>, transform_indices = @transform_2, window_bounds = array<i64: 1, 32>}, {pipeline_mode = #tpu.pipeline_mode<synchronous>, transform_indices = @transform_3, window_bounds = array<i64: 1, 32>}, {transform_indices = @transform_4, window_bounds = array<i64: 1, 32, 96>}, {transform_indices = @transform_5, window_bounds = array<i64: 1, 1, 96>}, {transform_indices = @transform_6, window_bounds = array<i64: 1, 32, 32>}, {transform_indices = @transform_7, window_bounds = array<i64: 1, 1, 32>}, {transform_indices = @transform_8, window_bounds = array<i64: 1, 1, 32>}, {transform_indices = @transform_9, window_bounds = array<i64: 1, 1, 32>}, {transform_indices = @transform_10, window_bounds = array<i64: 1, 32, 128>}, {transform_indices = @transform_11, window_bounds = array<i64: 1, 1, 128>}, {transform_indices = @transform_12, window_bounds = array<i64: 1, 128, 32>}, {transform_indices = @transform_13, window_bounds = array<i64: 1, 1, 32>}, {transform_indices = @transform_14, window_bounds = array<i64: 1, 1, 32>}, {transform_indices = @transform_15, window_bounds = array<i64: 1, 1, 32>}, {transform_indices = @transform_16, window_bounds = array<i64: 2, 1, 32>}]} {
    %c0_i32 = arith.constant 0 : i32
    %0 = arith.cmpi eq, %arg1, %c0_i32 : i32
    %1 = arith.extui %0 : i1 to i32
    %c0_i32_0 = arith.constant 0 : i32
    %2 = arith.cmpi ne, %1, %c0_i32_0 : i32
    scf.if %2 {
      %c0_113 = arith.constant 0 : index
      %c0_114 = arith.constant 0 : index
      %c0_115 = arith.constant 0 : index
      %198 = vector.load %arg2[%c0_113, %c0_114, %c0_115] : memref<2x8x32xf32, #tpu.memory_space<vmem>>, vector<2x8x32xf32>
      %199 = vector.shape_cast %198 : vector<2x8x32xf32> to vector<16x32xf32>
      %c0_116 = arith.constant 0 : index
      %c0_117 = arith.constant 0 : index
      %200 = vector.load %arg4[%c0_116, %c0_117] : memref<1x32xf32, #tpu.memory_space<vmem>>, vector<1x32xf32>
      %c0_118 = arith.constant 0 : index
      %c0_119 = arith.constant 0 : index
      %201 = vector.load %arg5[%c0_118, %c0_119] : memref<1x32xf32, #tpu.memory_space<vmem>>, vector<1x32xf32>
      %cst_120 = arith.constant dense<0.000000e+00> : vector<16xf32>
      %202 = vector.multi_reduction <add>, %199, %cst_120 [1] : vector<16x32xf32> to vector<16xf32>
      %203 = vector.shape_cast %202 : vector<16xf32> to vector<16x1xf32>
      %cst_121 = arith.constant 3.200000e+01 : f32
      %204 = vector.broadcast %cst_121 : f32 to vector<16x1xf32>
      %205 = arith.divf %203, %204 : vector<16x1xf32>
      %206 = vector.broadcast %205 : vector<16x1xf32> to vector<16x32xf32>
      %207 = arith.subf %199, %206 : vector<16x32xf32>
      %208 = arith.mulf %207, %207 : vector<16x32xf32>
      %cst_122 = arith.constant dense<0.000000e+00> : vector<16xf32>
      %209 = vector.multi_reduction <add>, %208, %cst_122 [1] : vector<16x32xf32> to vector<16xf32>
      %210 = vector.shape_cast %209 : vector<16xf32> to vector<16x1xf32>
      %cst_123 = arith.constant 3.200000e+01 : f32
      %211 = vector.broadcast %cst_123 : f32 to vector<16x1xf32>
      %212 = arith.divf %210, %211 : vector<16x1xf32>
      %213 = vector.broadcast %205 : vector<16x1xf32> to vector<16x32xf32>
      %214 = arith.subf %199, %213 : vector<16x32xf32>
      %cst_124 = arith.constant 9.99999974E-6 : f32
      %215 = vector.broadcast %cst_124 : f32 to vector<16x1xf32>
      %216 = arith.addf %212, %215 : vector<16x1xf32>
      %217 = math.rsqrt %216 : vector<16x1xf32>
      %218 = vector.broadcast %217 : vector<16x1xf32> to vector<16x32xf32>
      %219 = arith.mulf %214, %218 : vector<16x32xf32>
      %220 = vector.broadcast %200 : vector<1x32xf32> to vector<16x32xf32>
      %221 = arith.mulf %219, %220 : vector<16x32xf32>
      %222 = vector.broadcast %201 : vector<1x32xf32> to vector<16x32xf32>
      %223 = arith.addf %221, %222 : vector<16x32xf32>
      %c0_125 = arith.constant 0 : index
      %c0_126 = arith.constant 0 : index
      %224 = vector.load %arg19[%c0_125, %c0_126] : memref<16x32xf32, #tpu.memory_space<vmem>>, vector<16x32xf32>
      tpu.vector_store %arg19[%c0_125, %c0_126], %223 {strides = array<i32>} : memref<16x32xf32, #tpu.memory_space<vmem>>, vector<16x32xf32>,
    } else {
    }
    %c0 = arith.constant 0 : index
    %c0_1 = arith.constant 0 : index
    %3 = vector.load %arg19[%c0, %c0_1] : memref<16x32xf32, #tpu.memory_space<vmem>>, vector<16x32xf32>
    %4 = arith.truncf %3 : vector<16x32xf32> to vector<16x32xbf16>
    %c0_2 = arith.constant 0 : index
    %c0_3 = arith.constant 0 : index
    %c0_4 = arith.constant 0 : index
    %5 = vector.load %arg6[%c0_2, %c0_3, %c0_4] : memref<1x32x96xbf16, #tpu.memory_space<vmem>>, vector<1x32x96xbf16>
    %6 = vector.shape_cast %5 : vector<1x32x96xbf16> to vector<32x96xbf16>
    %cst = arith.constant dense<0.000000e+00> : vector<16x96xf32>
    %7 = tpu.matmul %4, %6, %cst {dimension_numbers = #tpu.dot_dimension_numbers<[1], [0], [0], [1], [0, 0, 1, 1], [], []>} : vector<16x32xbf16>, vector<32x96xbf16>, vector<16x96xf32> -> vector<16x96xf32>
    %c0_5 = arith.constant 0 : index
    %c0_6 = arith.constant 0 : index
    %c0_7 = arith.constant 0 : index
    %8 = vector.load %arg7[%c0_5, %c0_6, %c0_7] : memref<1x1x96xf32, #tpu.memory_space<vmem>>, vector<1x1x96xf32>
    %9 = vector.shape_cast %8 : vector<1x1x96xf32> to vector<1x96xf32>
    %10 = vector.broadcast %9 : vector<1x96xf32> to vector<16x96xf32>
    %11 = arith.addf %7, %10 : vector<16x96xf32>
    %12 = arith.truncf %11 : vector<16x96xf32> to vector<16x96xbf16>
    %c0_8 = arith.constant 0 : index
    %c0_9 = arith.constant 0 : index
    %13 = vector.load %arg20[%c0_8, %c0_9] : memref<16x96xbf16, #tpu.memory_space<vmem>>, vector<16x96xbf16>
    tpu.vector_store %arg20[%c0_8, %c0_9], %12 {strides = array<i32>} : memref<16x96xbf16, #tpu.memory_space<vmem>>, vector<16x96xbf16>,
    %c0_10 = arith.constant 0 : index
    %c0_11 = arith.constant 0 : index
    %c0_12 = arith.constant 0 : index
    %14 = vector.load %arg3[%c0_10, %c0_11, %c0_12] : memref<2x1x8xf32, #tpu.memory_space<vmem>>, vector<1x1x8xf32>
    %15 = vector.shape_cast %14 : vector<1x1x8xf32> to vector<1x8xf32>
    %c0_13 = arith.constant 0 : index
    %c0_14 = arith.constant 0 : index
    %16 = vector.load %arg20[%c0_13, %c0_14] : memref<16x96xbf16, #tpu.memory_space<vmem>>, vector<8x16xbf16>
    %c0_15 = arith.constant 0 : index
    %c32 = arith.constant 32 : index
    %17 = vector.load %arg20[%c0_15, %c32] : memref<16x96xbf16, #tpu.memory_space<vmem>>, vector<8x16xbf16>
    %c0_16 = arith.constant 0 : index
    %c64 = arith.constant 64 : index
    %18 = vector.load %arg20[%c0_16, %c64] : memref<16x96xbf16, #tpu.memory_space<vmem>>, vector<8x16xbf16>
    %cst_17 = arith.constant dense<0.000000e+00> : vector<8x8xf32>
    %19 = tpu.matmul %16, %17, %cst_17 {dimension_numbers = #tpu.dot_dimension_numbers<[1], [1], [0], [0], [0, 0, 1, 0], [], []>} : vector<8x16xbf16>, vector<8x16xbf16>, vector<8x8xf32> -> vector<8x8xf32>
    %cst_18 = arith.constant 2.500000e-01 : f32
    %20 = vector.broadcast %cst_18 : f32 to vector<8x8xf32>
    %21 = arith.mulf %19, %20 : vector<8x8xf32>
    %22 = vector.broadcast %15 : vector<1x8xf32> to vector<8x8xf32>
    %23 = arith.addf %21, %22 : vector<8x8xf32>
    %cst_19 = arith.constant dense<0xFF800000> : vector<8xf32>
    %24 = vector.multi_reduction <maximumf>, %23, %cst_19 [1] : vector<8x8xf32> to vector<8xf32>
    %25 = vector.shape_cast %24 : vector<8xf32> to vector<8x1xf32>
    %26 = vector.broadcast %25 : vector<8x1xf32> to vector<8x8xf32>
    %27 = arith.subf %23, %26 : vector<8x8xf32>
    %28 = math.exp %27 : vector<8x8xf32>
    %cst_20 = arith.constant dense<0.000000e+00> : vector<8xf32>
    %29 = vector.multi_reduction <add>, %28, %cst_20 [1] : vector<8x8xf32> to vector<8xf32>
    %30 = vector.shape_cast %29 : vector<8xf32> to vector<8x1xf32>
    %31 = tpu.reciprocal %30 {approx = true} : vector<8x1xf32> -> vector<8x1xf32>
    %32 = vector.broadcast %31 : vector<8x1xf32> to vector<8x8xf32>
    %33 = arith.mulf %28, %32 : vector<8x8xf32>
    %34 = arith.truncf %33 : vector<8x8xf32> to vector<8x8xbf16>
    %cst_21 = arith.constant dense<0.000000e+00> : vector<8x16xf32>
    %35 = tpu.matmul %34, %18, %cst_21 {dimension_numbers = #tpu.dot_dimension_numbers<[1], [0], [0], [1], [0, 0, 1, 1], [], []>} : vector<8x8xbf16>, vector<8x16xbf16>, vector<8x16xf32> -> vector<8x16xf32>
    %36 = arith.truncf %35 : vector<8x16xf32> to vector<8x16xbf16>
    %c0_22 = arith.constant 0 : index
    %c0_23 = arith.constant 0 : index
    %37 = vector.load %arg21[%c0_22, %c0_23] : memref<16x32xbf16, #tpu.memory_space<vmem>>, vector<8x16xbf16>
    tpu.vector_store %arg21[%c0_22, %c0_23], %36 {strides = array<i32>} : memref<16x32xbf16, #tpu.memory_space<vmem>>, vector<8x16xbf16>,
    %c0_24 = arith.constant 0 : index
    %c16 = arith.constant 16 : index
    %38 = vector.load %arg20[%c0_24, %c16] : memref<16x96xbf16, #tpu.memory_space<vmem>>, vector<8x16xbf16>
    %c0_25 = arith.constant 0 : index
    %c48 = arith.constant 48 : index
    %39 = vector.load %arg20[%c0_25, %c48] : memref<16x96xbf16, #tpu.memory_space<vmem>>, vector<8x16xbf16>
    %c0_26 = arith.constant 0 : index
    %c80 = arith.constant 80 : index
    %40 = vector.load %arg20[%c0_26, %c80] : memref<16x96xbf16, #tpu.memory_space<vmem>>, vector<8x16xbf16>
    %cst_27 = arith.constant dense<0.000000e+00> : vector<8x8xf32>
    %41 = tpu.matmul %38, %39, %cst_27 {dimension_numbers = #tpu.dot_dimension_numbers<[1], [1], [0], [0], [0, 0, 1, 0], [], []>} : vector<8x16xbf16>, vector<8x16xbf16>, vector<8x8xf32> -> vector<8x8xf32>
    %cst_28 = arith.constant 2.500000e-01 : f32
    %42 = vector.broadcast %cst_28 : f32 to vector<8x8xf32>
    %43 = arith.mulf %41, %42 : vector<8x8xf32>
    %44 = vector.broadcast %15 : vector<1x8xf32> to vector<8x8xf32>
    %45 = arith.addf %43, %44 : vector<8x8xf32>
    %cst_29 = arith.constant dense<0xFF800000> : vector<8xf32>
    %46 = vector.multi_reduction <maximumf>, %45, %cst_29 [1] : vector<8x8xf32> to vector<8xf32>
    %47 = vector.shape_cast %46 : vector<8xf32> to vector<8x1xf32>
    %48 = vector.broadcast %47 : vector<8x1xf32> to vector<8x8xf32>
    %49 = arith.subf %45, %48 : vector<8x8xf32>
    %50 = math.exp %49 : vector<8x8xf32>
    %cst_30 = arith.constant dense<0.000000e+00> : vector<8xf32>
    %51 = vector.multi_reduction <add>, %50, %cst_30 [1] : vector<8x8xf32> to vector<8xf32>
    %52 = vector.shape_cast %51 : vector<8xf32> to vector<8x1xf32>
    %53 = tpu.reciprocal %52 {approx = true} : vector<8x1xf32> -> vector<8x1xf32>
    %54 = vector.broadcast %53 : vector<8x1xf32> to vector<8x8xf32>
    %55 = arith.mulf %50, %54 : vector<8x8xf32>
    %56 = arith.truncf %55 : vector<8x8xf32> to vector<8x8xbf16>
    %cst_31 = arith.constant dense<0.000000e+00> : vector<8x16xf32>
    %57 = tpu.matmul %56, %40, %cst_31 {dimension_numbers = #tpu.dot_dimension_numbers<[1], [0], [0], [1], [0, 0, 1, 1], [], []>} : vector<8x8xbf16>, vector<8x16xbf16>, vector<8x16xf32> -> vector<8x16xf32>
    %58 = arith.truncf %57 : vector<8x16xf32> to vector<8x16xbf16>
    %c0_32 = arith.constant 0 : index
    %c16_33 = arith.constant 16 : index
    %59 = vector.load %arg21[%c0_32, %c16_33] : memref<16x32xbf16, #tpu.memory_space<vmem>>, vector<8x16xbf16>
    tpu.vector_store %arg21[%c0_32, %c16_33], %58 {strides = array<i32>} : memref<16x32xbf16, #tpu.memory_space<vmem>>, vector<8x16xbf16>,
    %c1 = arith.constant 1 : index
    %c0_34 = arith.constant 0 : index
    %c0_35 = arith.constant 0 : index
    %60 = vector.load %arg3[%c1, %c0_34, %c0_35] : memref<2x1x8xf32, #tpu.memory_space<vmem>>, vector<1x1x8xf32>
    %61 = vector.shape_cast %60 : vector<1x1x8xf32> to vector<1x8xf32>
    %c8 = arith.constant 8 : index
    %c0_36 = arith.constant 0 : index
    %62 = vector.load %arg20[%c8, %c0_36] : memref<16x96xbf16, #tpu.memory_space<vmem>>, vector<8x16xbf16>
    %c8_37 = arith.constant 8 : index
    %c32_38 = arith.constant 32 : index
    %63 = vector.load %arg20[%c8_37, %c32_38] : memref<16x96xbf16, #tpu.memory_space<vmem>>, vector<8x16xbf16>
    %c8_39 = arith.constant 8 : index
    %c64_40 = arith.constant 64 : index
    %64 = vector.load %arg20[%c8_39, %c64_40] : memref<16x96xbf16, #tpu.memory_space<vmem>>, vector<8x16xbf16>
    %cst_41 = arith.constant dense<0.000000e+00> : vector<8x8xf32>
    %65 = tpu.matmul %62, %63, %cst_41 {dimension_numbers = #tpu.dot_dimension_numbers<[1], [1], [0], [0], [0, 0, 1, 0], [], []>} : vector<8x16xbf16>, vector<8x16xbf16>, vector<8x8xf32> -> vector<8x8xf32>
    %cst_42 = arith.constant 2.500000e-01 : f32
    %66 = vector.broadcast %cst_42 : f32 to vector<8x8xf32>
    %67 = arith.mulf %65, %66 : vector<8x8xf32>
    %68 = vector.broadcast %61 : vector<1x8xf32> to vector<8x8xf32>
    %69 = arith.addf %67, %68 : vector<8x8xf32>
    %cst_43 = arith.constant dense<0xFF800000> : vector<8xf32>
    %70 = vector.multi_reduction <maximumf>, %69, %cst_43 [1] : vector<8x8xf32> to vector<8xf32>
    %71 = vector.shape_cast %70 : vector<8xf32> to vector<8x1xf32>
    %72 = vector.broadcast %71 : vector<8x1xf32> to vector<8x8xf32>
    %73 = arith.subf %69, %72 : vector<8x8xf32>
    %74 = math.exp %73 : vector<8x8xf32>
    %cst_44 = arith.constant dense<0.000000e+00> : vector<8xf32>
    %75 = vector.multi_reduction <add>, %74, %cst_44 [1] : vector<8x8xf32> to vector<8xf32>
    %76 = vector.shape_cast %75 : vector<8xf32> to vector<8x1xf32>
    %77 = tpu.reciprocal %76 {approx = true} : vector<8x1xf32> -> vector<8x1xf32>
    %78 = vector.broadcast %77 : vector<8x1xf32> to vector<8x8xf32>
    %79 = arith.mulf %74, %78 : vector<8x8xf32>
    %80 = arith.truncf %79 : vector<8x8xf32> to vector<8x8xbf16>
    %cst_45 = arith.constant dense<0.000000e+00> : vector<8x16xf32>
    %81 = tpu.matmul %80, %64, %cst_45 {dimension_numbers = #tpu.dot_dimension_numbers<[1], [0], [0], [1], [0, 0, 1, 1], [], []>} : vector<8x8xbf16>, vector<8x16xbf16>, vector<8x16xf32> -> vector<8x16xf32>
    %82 = arith.truncf %81 : vector<8x16xf32> to vector<8x16xbf16>
    %c8_46 = arith.constant 8 : index
    %c0_47 = arith.constant 0 : index
    %83 = vector.load %arg21[%c8_46, %c0_47] : memref<16x32xbf16, #tpu.memory_space<vmem>>, vector<8x16xbf16>
    tpu.vector_store %arg21[%c8_46, %c0_47], %82 {strides = array<i32>} : memref<16x32xbf16, #tpu.memory_space<vmem>>, vector<8x16xbf16>,
    %c8_48 = arith.constant 8 : index
    %c16_49 = arith.constant 16 : index
    %84 = vector.load %arg20[%c8_48, %c16_49] : memref<16x96xbf16, #tpu.memory_space<vmem>>, vector<8x16xbf16>
    %c8_50 = arith.constant 8 : index
    %c48_51 = arith.constant 48 : index
    %85 = vector.load %arg20[%c8_50, %c48_51] : memref<16x96xbf16, #tpu.memory_space<vmem>>, vector<8x16xbf16>
    %c8_52 = arith.constant 8 : index
    %c80_53 = arith.constant 80 : index
    %86 = vector.load %arg20[%c8_52, %c80_53] : memref<16x96xbf16, #tpu.memory_space<vmem>>, vector<8x16xbf16>
    %cst_54 = arith.constant dense<0.000000e+00> : vector<8x8xf32>
    %87 = tpu.matmul %84, %85, %cst_54 {dimension_numbers = #tpu.dot_dimension_numbers<[1], [1], [0], [0], [0, 0, 1, 0], [], []>} : vector<8x16xbf16>, vector<8x16xbf16>, vector<8x8xf32> -> vector<8x8xf32>
    %cst_55 = arith.constant 2.500000e-01 : f32
    %88 = vector.broadcast %cst_55 : f32 to vector<8x8xf32>
    %89 = arith.mulf %87, %88 : vector<8x8xf32>
    %90 = vector.broadcast %61 : vector<1x8xf32> to vector<8x8xf32>
    %91 = arith.addf %89, %90 : vector<8x8xf32>
    %cst_56 = arith.constant dense<0xFF800000> : vector<8xf32>
    %92 = vector.multi_reduction <maximumf>, %91, %cst_56 [1] : vector<8x8xf32> to vector<8xf32>
    %93 = vector.shape_cast %92 : vector<8xf32> to vector<8x1xf32>
    %94 = vector.broadcast %93 : vector<8x1xf32> to vector<8x8xf32>
    %95 = arith.subf %91, %94 : vector<8x8xf32>
    %96 = math.exp %95 : vector<8x8xf32>
    %cst_57 = arith.constant dense<0.000000e+00> : vector<8xf32>
    %97 = vector.multi_reduction <add>, %96, %cst_57 [1] : vector<8x8xf32> to vector<8xf32>
    %98 = vector.shape_cast %97 : vector<8xf32> to vector<8x1xf32>
    %99 = tpu.reciprocal %98 {approx = true} : vector<8x1xf32> -> vector<8x1xf32>
    %100 = vector.broadcast %99 : vector<8x1xf32> to vector<8x8xf32>
    %101 = arith.mulf %96, %100 : vector<8x8xf32>
    %102 = arith.truncf %101 : vector<8x8xf32> to vector<8x8xbf16>
    %cst_58 = arith.constant dense<0.000000e+00> : vector<8x16xf32>
    %103 = tpu.matmul %102, %86, %cst_58 {dimension_numbers = #tpu.dot_dimension_numbers<[1], [0], [0], [1], [0, 0, 1, 1], [], []>} : vector<8x8xbf16>, vector<8x16xbf16>, vector<8x16xf32> -> vector<8x16xf32>
    %104 = arith.truncf %103 : vector<8x16xf32> to vector<8x16xbf16>
    %c8_59 = arith.constant 8 : index
    %c16_60 = arith.constant 16 : index
    %105 = vector.load %arg21[%c8_59, %c16_60] : memref<16x32xbf16, #tpu.memory_space<vmem>>, vector<8x16xbf16>
    tpu.vector_store %arg21[%c8_59, %c16_60], %104 {strides = array<i32>} : memref<16x32xbf16, #tpu.memory_space<vmem>>, vector<8x16xbf16>,
    %c0_61 = arith.constant 0 : index
    %c0_62 = arith.constant 0 : index
    %106 = vector.load %arg21[%c0_61, %c0_62] : memref<16x32xbf16, #tpu.memory_space<vmem>>, vector<16x32xbf16>
    %c0_63 = arith.constant 0 : index
    %c0_64 = arith.constant 0 : index
    %c0_65 = arith.constant 0 : index
    %107 = vector.load %arg8[%c0_63, %c0_64, %c0_65] : memref<1x32x32xbf16, #tpu.memory_space<vmem>>, vector<1x32x32xbf16>
    %108 = vector.shape_cast %107 : vector<1x32x32xbf16> to vector<32x32xbf16>
    %cst_66 = arith.constant dense<0.000000e+00> : vector<16x32xf32>
    %109 = tpu.matmul %106, %108, %cst_66 {dimension_numbers = #tpu.dot_dimension_numbers<[1], [0], [0], [1], [0, 0, 1, 1], [], []>} : vector<16x32xbf16>, vector<32x32xbf16>, vector<16x32xf32> -> vector<16x32xf32>
    %c0_67 = arith.constant 0 : index
    %c0_68 = arith.constant 0 : index
    %c0_69 = arith.constant 0 : index
    %110 = vector.load %arg9[%c0_67, %c0_68, %c0_69] : memref<1x1x32xf32, #tpu.memory_space<vmem>>, vector<1x1x32xf32>
    %111 = vector.shape_cast %110 : vector<1x1x32xf32> to vector<1x32xf32>
    %112 = vector.broadcast %111 : vector<1x32xf32> to vector<16x32xf32>
    %113 = arith.addf %109, %112 : vector<16x32xf32>
    %114 = arith.addf %113, %3 : vector<16x32xf32>
    %c0_70 = arith.constant 0 : index
    %c0_71 = arith.constant 0 : index
    %c0_72 = arith.constant 0 : index
    %115 = vector.load %arg10[%c0_70, %c0_71, %c0_72] : memref<1x1x32xf32, #tpu.memory_space<vmem>>, vector<1x1x32xf32>
    %116 = vector.shape_cast %115 : vector<1x1x32xf32> to vector<1x32xf32>
    %c0_73 = arith.constant 0 : index
    %c0_74 = arith.constant 0 : index
    %c0_75 = arith.constant 0 : index
    %117 = vector.load %arg11[%c0_73, %c0_74, %c0_75] : memref<1x1x32xf32, #tpu.memory_space<vmem>>, vector<1x1x32xf32>
    %118 = vector.shape_cast %117 : vector<1x1x32xf32> to vector<1x32xf32>
    %cst_76 = arith.constant dense<0.000000e+00> : vector<16xf32>
    %119 = vector.multi_reduction <add>, %114, %cst_76 [1] : vector<16x32xf32> to vector<16xf32>
    %120 = vector.shape_cast %119 : vector<16xf32> to vector<16x1xf32>
    %cst_77 = arith.constant 3.200000e+01 : f32
    %121 = vector.broadcast %cst_77 : f32 to vector<16x1xf32>
    %122 = arith.divf %120, %121 : vector<16x1xf32>
    %123 = vector.broadcast %122 : vector<16x1xf32> to vector<16x32xf32>
    %124 = arith.subf %114, %123 : vector<16x32xf32>
    %125 = arith.mulf %124, %124 : vector<16x32xf32>
    %cst_78 = arith.constant dense<0.000000e+00> : vector<16xf32>
    %126 = vector.multi_reduction <add>, %125, %cst_78 [1] : vector<16x32xf32> to vector<16xf32>
    %127 = vector.shape_cast %126 : vector<16xf32> to vector<16x1xf32>
    %cst_79 = arith.constant 3.200000e+01 : f32
    %128 = vector.broadcast %cst_79 : f32 to vector<16x1xf32>
    %129 = arith.divf %127, %128 : vector<16x1xf32>
    %130 = vector.broadcast %122 : vector<16x1xf32> to vector<16x32xf32>
    %131 = arith.subf %114, %130 : vector<16x32xf32>
    %cst_80 = arith.constant 9.99999974E-6 : f32
    %132 = vector.broadcast %cst_80 : f32 to vector<16x1xf32>
    %133 = arith.addf %129, %132 : vector<16x1xf32>
    %134 = math.rsqrt %133 : vector<16x1xf32>
    %135 = vector.broadcast %134 : vector<16x1xf32> to vector<16x32xf32>
    %136 = arith.mulf %131, %135 : vector<16x32xf32>
    %137 = vector.broadcast %116 : vector<1x32xf32> to vector<16x32xf32>
    %138 = arith.mulf %136, %137 : vector<16x32xf32>
    %139 = vector.broadcast %118 : vector<1x32xf32> to vector<16x32xf32>
    %140 = arith.addf %138, %139 : vector<16x32xf32>
    %141 = arith.truncf %140 : vector<16x32xf32> to vector<16x32xbf16>
    %cst_81 = arith.constant 0.000000e+00 : f32
    %142 = vector.broadcast %cst_81 : f32 to vector<16x32xf32>
    %c0_82 = arith.constant 0 : index
    %c0_83 = arith.constant 0 : index
    %c0_84 = arith.constant 0 : index
    %143 = vector.load %arg12[%c0_82, %c0_83, %c0_84] : memref<1x32x128xbf16, #tpu.memory_space<vmem>>, vector<1x32x128xbf16>
    %144 = vector.shape_cast %143 : vector<1x32x128xbf16> to vector<32x128xbf16>
    %cst_85 = arith.constant dense<0.000000e+00> : vector<16x128xf32>
    %145 = tpu.matmul %141, %144, %cst_85 {dimension_numbers = #tpu.dot_dimension_numbers<[1], [0], [0], [1], [0, 0, 1, 1], [], []>} : vector<16x32xbf16>, vector<32x128xbf16>, vector<16x128xf32> -> vector<16x128xf32>
    %c0_86 = arith.constant 0 : index
    %c0_87 = arith.constant 0 : index
    %c0_88 = arith.constant 0 : index
    %146 = vector.load %arg13[%c0_86, %c0_87, %c0_88] : memref<1x1x128xf32, #tpu.memory_space<vmem>>, vector<1x1x128xf32>
    %147 = vector.shape_cast %146 : vector<1x1x128xf32> to vector<1x128xf32>
    %148 = vector.broadcast %147 : vector<1x128xf32> to vector<16x128xf32>
    %149 = arith.addf %145, %148 : vector<16x128xf32>
    %cst_89 = arith.constant 5.000000e-01 : f32
    %150 = vector.broadcast %cst_89 : f32 to vector<16x128xf32>
    %151 = arith.mulf %150, %149 : vector<16x128xf32>
    %cst_90 = arith.constant 0.707106769 : f32
    %152 = vector.broadcast %cst_90 : f32 to vector<16x128xf32>
    %153 = arith.mulf %149, %152 : vector<16x128xf32>
    %154 = math.erf %153 : vector<16x128xf32>
    %cst_91 = arith.constant 1.000000e+00 : f32
    %155 = vector.broadcast %cst_91 : f32 to vector<16x128xf32>
    %156 = arith.addf %155, %154 : vector<16x128xf32>
    %157 = arith.mulf %151, %156 : vector<16x128xf32>
    %158 = arith.truncf %157 : vector<16x128xf32> to vector<16x128xbf16>
    %c0_92 = arith.constant 0 : index
    %c0_93 = arith.constant 0 : index
    %c0_94 = arith.constant 0 : index
    %159 = vector.load %arg14[%c0_92, %c0_93, %c0_94] : memref<1x128x32xbf16, #tpu.memory_space<vmem>>, vector<1x128x32xbf16>
    %160 = vector.shape_cast %159 : vector<1x128x32xbf16> to vector<128x32xbf16>
    %cst_95 = arith.constant dense<0.000000e+00> : vector<16x32xf32>
    %161 = tpu.matmul %158, %160, %cst_95 {dimension_numbers = #tpu.dot_dimension_numbers<[1], [0], [0], [1], [0, 0, 1, 1], [], []>} : vector<16x128xbf16>, vector<128x32xbf16>, vector<16x32xf32> -> vector<16x32xf32>
    %162 = arith.addf %142, %161 : vector<16x32xf32>
    %c0_96 = arith.constant 0 : index
    %c0_97 = arith.constant 0 : index
    %c0_98 = arith.constant 0 : index
    %163 = vector.load %arg15[%c0_96, %c0_97, %c0_98] : memref<1x1x32xf32, #tpu.memory_space<vmem>>, vector<1x1x32xf32>
    %164 = vector.shape_cast %163 : vector<1x1x32xf32> to vector<1x32xf32>
    %165 = vector.broadcast %164 : vector<1x32xf32> to vector<16x32xf32>
    %166 = arith.addf %162, %165 : vector<16x32xf32>
    %167 = arith.addf %166, %140 : vector<16x32xf32>
    %c0_99 = arith.constant 0 : index
    %c0_100 = arith.constant 0 : index
    %c0_101 = arith.constant 0 : index
    %168 = vector.load %arg16[%c0_99, %c0_100, %c0_101] : memref<1x1x32xf32, #tpu.memory_space<vmem>>, vector<1x1x32xf32>
    %169 = vector.shape_cast %168 : vector<1x1x32xf32> to vector<1x32xf32>
    %c0_102 = arith.constant 0 : index
    %c0_103 = arith.constant 0 : index
    %c0_104 = arith.constant 0 : index
    %170 = vector.load %arg17[%c0_102, %c0_103, %c0_104] : memref<1x1x32xf32, #tpu.memory_space<vmem>>, vector<1x1x32xf32>
    %171 = vector.shape_cast %170 : vector<1x1x32xf32> to vector<1x32xf32>
    %cst_105 = arith.constant dense<0.000000e+00> : vector<16xf32>
    %172 = vector.multi_reduction <add>, %167, %cst_105 [1] : vector<16x32xf32> to vector<16xf32>
    %173 = vector.shape_cast %172 : vector<16xf32> to vector<16x1xf32>
    %cst_106 = arith.constant 3.200000e+01 : f32
    %174 = vector.broadcast %cst_106 : f32 to vector<16x1xf32>
    %175 = arith.divf %173, %174 : vector<16x1xf32>
    %176 = vector.broadcast %175 : vector<16x1xf32> to vector<16x32xf32>
    %177 = arith.subf %167, %176 : vector<16x32xf32>
    %178 = arith.mulf %177, %177 : vector<16x32xf32>
    %cst_107 = arith.constant dense<0.000000e+00> : vector<16xf32>
    %179 = vector.multi_reduction <add>, %178, %cst_107 [1] : vector<16x32xf32> to vector<16xf32>
    %180 = vector.shape_cast %179 : vector<16xf32> to vector<16x1xf32>
    %cst_108 = arith.constant 3.200000e+01 : f32
    %181 = vector.broadcast %cst_108 : f32 to vector<16x1xf32>
    %182 = arith.divf %180, %181 : vector<16x1xf32>
    %183 = vector.broadcast %175 : vector<16x1xf32> to vector<16x32xf32>
    %184 = arith.subf %167, %183 : vector<16x32xf32>
    %cst_109 = arith.constant 9.99999974E-6 : f32
    %185 = vector.broadcast %cst_109 : f32 to vector<16x1xf32>
    %186 = arith.addf %182, %185 : vector<16x1xf32>
    %187 = math.rsqrt %186 : vector<16x1xf32>
    %188 = vector.broadcast %187 : vector<16x1xf32> to vector<16x32xf32>
    %189 = arith.mulf %184, %188 : vector<16x32xf32>
    %190 = vector.broadcast %169 : vector<1x32xf32> to vector<16x32xf32>
    %191 = arith.mulf %189, %190 : vector<16x32xf32>
    %192 = vector.broadcast %171 : vector<1x32xf32> to vector<16x32xf32>
    %193 = arith.addf %191, %192 : vector<16x32xf32>
    %c0_110 = arith.constant 0 : index
    %c0_111 = arith.constant 0 : index
    %194 = vector.load %arg19[%c0_110, %c0_111] : memref<16x32xf32, #tpu.memory_space<vmem>>, vector<16x32xf32>
    tpu.vector_store %arg19[%c0_110, %c0_111], %193 {strides = array<i32>} : memref<16x32xf32, #tpu.memory_space<vmem>>, vector<16x32xf32>,
    %c1_i32 = arith.constant 1 : i32
    %195 = arith.cmpi eq, %arg1, %c1_i32 : i32
    %196 = arith.extui %195 : i1 to i32
    %c0_i32_112 = arith.constant 0 : i32
    %197 = arith.cmpi ne, %196, %c0_i32_112 : i32
    scf.if %197 {
      %198 = vector.shape_cast %193 : vector<16x32xf32> to vector<2x8x32xf32>
      %199 = vector.extract_strided_slice %198 {offsets = [0, 0, 0], sizes = [2, 1, 32], strides = [1, 1, 1]} : vector<2x8x32xf32> to vector<2x1x32xf32>
      %c0_113 = arith.constant 0 : index
      %c0_114 = arith.constant 0 : index
      %c0_115 = arith.constant 0 : index
      %200 = vector.load %arg18[%c0_113, %c0_114, %c0_115] : memref<2x1x32xf32, #tpu.memory_space<vmem>>, vector<2x1x32xf32>
      tpu.vector_store %arg18[%c0_113, %c0_114, %c0_115], %199 {strides = array<i32>} : memref<2x1x32xf32, #tpu.memory_space<vmem>>, vector<2x1x32xf32>,
    } else {
    }
    return
  }
  func.func @transform_0(%arg0: i32, %arg1: i32) -> (i32, i32, i32) {
    %c0_i32 = arith.constant 0 : i32
    %c0_i32_0 = arith.constant 0 : i32
    %c0_i32_1 = arith.constant 0 : i32
    return %arg0, %c0_i32, %c0_i32_0 : i32, i32, i32
  }
  func.func @transform_1(%arg0: i32, %arg1: i32) -> (i32, i32, i32) {
    %c0_i32 = arith.constant 0 : i32
    %c0_i32_0 = arith.constant 0 : i32
    %c0_i32_1 = arith.constant 0 : i32
    return %arg0, %c0_i32, %c0_i32_0 : i32, i32, i32
  }
  func.func @transform_2(%arg0: i32, %arg1: i32) -> (i32, i32) {
    %c0_i32 = arith.constant 0 : i32
    %c0_i32_0 = arith.constant 0 : i32
    %c0_i32_1 = arith.constant 0 : i32
    return %c0_i32, %c0_i32_0 : i32, i32
  }
  func.func @transform_3(%arg0: i32, %arg1: i32) -> (i32, i32) {
    %c0_i32 = arith.constant 0 : i32
    %c0_i32_0 = arith.constant 0 : i32
    %c0_i32_1 = arith.constant 0 : i32
    return %c0_i32, %c0_i32_0 : i32, i32
  }
  func.func @transform_4(%arg0: i32, %arg1: i32) -> (i32, i32, i32) {
    %c0_i32 = arith.constant 0 : i32
    %c0_i32_0 = arith.constant 0 : i32
    %c0_i32_1 = arith.constant 0 : i32
    return %arg1, %c0_i32, %c0_i32_0 : i32, i32, i32
  }
  func.func @transform_5(%arg0: i32, %arg1: i32) -> (i32, i32, i32) {
    %c0_i32 = arith.constant 0 : i32
    %c0_i32_0 = arith.constant 0 : i32
    %c0_i32_1 = arith.constant 0 : i32
    return %arg1, %c0_i32, %c0_i32_0 : i32, i32, i32
  }
  func.func @transform_6(%arg0: i32, %arg1: i32) -> (i32, i32, i32) {
    %c0_i32 = arith.constant 0 : i32
    %c0_i32_0 = arith.constant 0 : i32
    %c0_i32_1 = arith.constant 0 : i32
    return %arg1, %c0_i32, %c0_i32_0 : i32, i32, i32
  }
  func.func @transform_7(%arg0: i32, %arg1: i32) -> (i32, i32, i32) {
    %c0_i32 = arith.constant 0 : i32
    %c0_i32_0 = arith.constant 0 : i32
    %c0_i32_1 = arith.constant 0 : i32
    return %arg1, %c0_i32, %c0_i32_0 : i32, i32, i32
  }
  func.func @transform_8(%arg0: i32, %arg1: i32) -> (i32, i32, i32) {
    %c0_i32 = arith.constant 0 : i32
    %c0_i32_0 = arith.constant 0 : i32
    %c0_i32_1 = arith.constant 0 : i32
    return %arg1, %c0_i32, %c0_i32_0 : i32, i32, i32
  }
  func.func @transform_9(%arg0: i32, %arg1: i32) -> (i32, i32, i32) {
    %c0_i32 = arith.constant 0 : i32
    %c0_i32_0 = arith.constant 0 : i32
    %c0_i32_1 = arith.constant 0 : i32
    return %arg1, %c0_i32, %c0_i32_0 : i32, i32, i32
  }
  func.func @transform_10(%arg0: i32, %arg1: i32) -> (i32, i32, i32) {
    %c0_i32 = arith.constant 0 : i32
    %c0_i32_0 = arith.constant 0 : i32
    %c0_i32_1 = arith.constant 0 : i32
    return %arg1, %c0_i32, %c0_i32_0 : i32, i32, i32
  }
  func.func @transform_11(%arg0: i32, %arg1: i32) -> (i32, i32, i32) {
    %c0_i32 = arith.constant 0 : i32
    %c0_i32_0 = arith.constant 0 : i32
    %c0_i32_1 = arith.constant 0 : i32
    return %arg1, %c0_i32, %c0_i32_0 : i32, i32, i32
  }
  func.func @transform_12(%arg0: i32, %arg1: i32) -> (i32, i32, i32) {
    %c0_i32 = arith.constant 0 : i32
    %c0_i32_0 = arith.constant 0 : i32
    %c0_i32_1 = arith.constant 0 : i32
    return %arg1, %c0_i32, %c0_i32_0 : i32, i32, i32
  }
  func.func @transform_13(%arg0: i32, %arg1: i32) -> (i32, i32, i32) {
    %c0_i32 = arith.constant 0 : i32
    %c0_i32_0 = arith.constant 0 : i32
    %c0_i32_1 = arith.constant 0 : i32
    return %arg1, %c0_i32, %c0_i32_0 : i32, i32, i32
  }
  func.func @transform_14(%arg0: i32, %arg1: i32) -> (i32, i32, i32) {
    %c0_i32 = arith.constant 0 : i32
    %c0_i32_0 = arith.constant 0 : i32
    %c0_i32_1 = arith.constant 0 : i32
    return %arg1, %c0_i32, %c0_i32_0 : i32, i32, i32
  }
  func.func @transform_15(%arg0: i32, %arg1: i32) -> (i32, i32, i32) {
    %c0_i32 = arith.constant 0 : i32
    %c0_i32_0 = arith.constant 0 : i32
    %c0_i32_1 = arith.constant 0 : i32
    return %arg1, %c0_i32, %c0_i32_0 : i32, i32, i32
  }
  func.func @transform_16(%arg0: i32, %arg1: i32) -> (i32, i32, i32) {
    %c0_i32 = arith.constant 0 : i32
    %c0_i32_0 = arith.constant 0 : i32
    %c0_i32_1 = arith.constant 0 : i32
    return %arg0, %c0_i32, %c0_i32_0 : i32, i32, i32
  }
}

</mosaic_0001>

<llo_original>
// kernel: _lambda_.1
$region0: #{_lambda_.1}
  #allocation0 [shape = 'u32[]', space=smem, size = 0x4, offset = 0x4, fixed_abs, tag = 'smem constant byte address 0x4 - core index']
  #allocation1 [shape = 'u32[72,128]{1,0:T(1,128)}', space=vmem, size = 0x9000, scoped, tag = 'internal scratch']
  #allocation2 [shape = 'f32[16,32]{1,0:T(8,128)}', space=vmem, size = 0x2000, scoped, tag = 'scratch operand']
  #allocation3 [shape = 'bf16[16,96]{1,0:T(8,128)(2,1)}', space=vmem, size = 0x1000, scoped, tag = 'scratch operand']
  #allocation4 [shape = 'bf16[16,32]{1,0:T(8,128)(2,1)}', space=vmem, size = 0x1000, scoped, tag = 'scratch operand']
  %s0 = inlined_call_operand.vmem [shape: f32[4,8,32], index: 0, kind: input, shape index: {}]
  %s1 = inlined_call_operand.vmem [shape: f32[4,1,8], index: 1, kind: input, shape index: {}]
  %s2 = inlined_call_operand.vmem [shape: f32[1,32], index: 2, kind: input, shape index: {}]
  %s3 = inlined_call_operand.vmem [shape: f32[1,32], index: 3, kind: input, shape index: {}]
  %s4 = inlined_call_operand.vmem [shape: bf16[2,32,96], index: 4, kind: input, shape index: {}]
  %s5 = inlined_call_operand.vmem [shape: f32[2,1,96], index: 5, kind: input, shape index: {}]
  %s6 = inlined_call_operand.vmem [shape: bf16[2,32,32], index: 6, kind: input, shape index: {}]
  %s7 = inlined_call_operand.vmem [shape: f32[2,1,32], index: 7, kind: input, shape index: {}]
  %s8 = inlined_call_operand.vmem [shape: f32[2,1,32], index: 8, kind: input, shape index: {}]
  %s9 = inlined_call_operand.vmem [shape: f32[2,1,32], index: 9, kind: input, shape index: {}]
  %s10 = inlined_call_operand.vmem [shape: bf16[2,32,128], index: 10, kind: input, shape index: {}]
  %s11 = inlined_call_operand.vmem [shape: f32[2,1,128], index: 11, kind: input, shape index: {}]
  %s12 = inlined_call_operand.vmem [shape: bf16[2,128,32], index: 12, kind: input, shape index: {}]
  %s13 = inlined_call_operand.vmem [shape: f32[2,1,32], index: 13, kind: input, shape index: {}]
  %s14 = inlined_call_operand.vmem [shape: f32[2,1,32], index: 14, kind: input, shape index: {}]
  %s15 = inlined_call_operand.vmem [shape: f32[2,1,32], index: 15, kind: input, shape index: {}]
  %s16 = inlined_call_operand.hbm [shape: f32[4,1,32], index: 16, kind: output, shape index: {}]
  %s17 = sld [smem:[#allocation0]]
  $region105: #{_lambda_.1} parent=0
    _
  %s19 = ssub.s32 1, %s17
  %s20 = scalar_select 0, %s19, %s17
  $region1: #{_lambda_.1} parent=0
    #allocation5 [shape = 'u8[2048]{0}', space=vmem, size = 0x800, scoped, tag = 'output window, operand 0']
    #allocation6 [shape = 's32[2]{0}', space=sflag, size = 0x8, scoped, tag = 'scoped memory for _lambda_.1']
    %21 = vsyncpa [#allocation6], 0
    %s22 = scalar_lea.sflag [#allocation6], 1
    %23 = vsyncpa %s22, 0
    loop: start=0, step=1, limit=6
    $region2: #{_lambda_.1} parent=1 // loop_pre_header
      _
    $region3: #{_lambda_.1} parent=1 // loop_header
      %s25 = sphi 0, %s29
      %p26 = scmp.ge.s32.totalorder %s25, 6
      %s32 = sphi 0, %s44
      %s33 = sphi 0, %s40
      %s34 = sphi 0, %s32
      %s35 = sphi 0, %s33
      %s36 = sphi 0, %s34
      %s37 = sphi 0, %s35
      %s47 = sphi 0, %s49
      %s50 = sphi 0, %s47
      %s51 = sphi 0, %s50
      %s67 = sphi 0, %s51
      %s73 = sphi 0, %s75
      %s76 = sphi 0, %s73
      %s77 = sphi 0, %s76
      %s93 = sphi 0, %s77
      %s97 = sphi 0, %s97
      %s99 = sphi 0, %s97
      %s100 = sphi 0, %s99
      %s114 = sphi 0, %s100
      %s118 = sphi 0, %s118
      %s120 = sphi 0, %s118
      %s121 = sphi 0, %s120
      %s135 = sphi 0, %s121
      %s141 = sphi 0, %s143
      %s144 = sphi 0, %s141
      %s145 = sphi 0, %s144
      %s161 = sphi 0, %s145
      %s167 = sphi 0, %s169
      %s170 = sphi 0, %s167
      %s171 = sphi 0, %s170
      %s187 = sphi 0, %s171
      %s193 = sphi 0, %s195
      %s196 = sphi 0, %s193
      %s197 = sphi 0, %s196
      %s213 = sphi 0, %s197
      %s219 = sphi 0, %s221
      %s222 = sphi 0, %s219
      %s223 = sphi 0, %s222
      %s239 = sphi 0, %s223
      %s245 = sphi 0, %s247
      %s248 = sphi 0, %s245
      %s249 = sphi 0, %s248
      %s265 = sphi 0, %s249
      %s271 = sphi 0, %s273
      %s274 = sphi 0, %s271
      %s275 = sphi 0, %s274
      %s291 = sphi 0, %s275
      %s297 = sphi 0, %s299
      %s300 = sphi 0, %s297
      %s301 = sphi 0, %s300
      %s317 = sphi 0, %s301
      %s323 = sphi 0, %s325
      %s326 = sphi 0, %s323
      %s327 = sphi 0, %s326
      %s343 = sphi 0, %s327
      %s349 = sphi 0, %s351
      %s352 = sphi 0, %s349
      %s353 = sphi 0, %s352
      %s369 = sphi 0, %s353
      %s375 = sphi 0, %s377
      %s378 = sphi 0, %s375
      %s379 = sphi 0, %s378
      %s395 = sphi 0, %s379
      %s401 = sphi 0, %s403
      %s404 = sphi 0, %s401
      %s405 = sphi 0, %s404
      %s421 = sphi 0, %s405
      %s427 = sphi 0, %s429
      %s430 = sphi 0, %s427
      %s431 = sphi 0, %s430
      %s447 = sphi 0, %s431
      %s453 = sphi 0, %s455
      %s456 = sphi 0, %s453
      %s457 = sphi 0, %s456
      %s473 = sphi 0, %s457
    $region4: #{_lambda_.1} parent=1 // loop_header_branch
      %28 = sbr.rel (%p26) target = $region8
    $region5: #{_lambda_.1} parent=1 // loop_body
      %s30 = ssub.s32 %s25, 1
      %s31 = ssub.s32 %s25, 2
      %s38 = sadd.s32 1, %s33
      %p39 = scmp.ge.s32.totalorder %s38, 2
      %s40 = scalar_select %p39, 0, %s38
      %s41 = sadd.s32 1, %s32
      %s42 = scalar_select %p39, %s41, %s32
      %p43 = scmp.ge.s32.totalorder %s42, 2
      %s44 = scalar_select %p43, 0, %s42
      %s45 = ssub.s32 %s32, %s44
      %p46 = scmp.eq.s32.totalorder %s45, 0
      %s48 = sadd.s32 %s47, 1
      %s49 = scalar_select %p46, %s47, %s48
      %p52 = pneg %p46
      %p53 = scmp.eq.s32.totalorder %s25, 3
      %p54 = por %p52, %p53
      %p55 = scmp.ne.s32.totalorder %s47, %s50
      %p56 = scmp.eq.s32.totalorder %s25, 0
      %p57 = por %p55, %p56
      %p58 = scmp.ne.s32.totalorder %s47, %s50
      %p59 = scmp.eq.s32.totalorder %s30, 3
      %p60 = por %p58, %p59
      %p61 = scmp.ne.s32.totalorder %s50, %s51
      %p62 = scmp.eq.s32.totalorder %s30, 0
      %p63 = por %p61, %p62
      %p64 = scmp.ne.s32.totalorder %s50, %s51
      %p65 = scmp.eq.s32.totalorder %s31, 3
      %p66 = por %p64, %p65
      %p68 = scmp.ne.s32.totalorder %s51, %s67
      %p69 = scmp.eq.s32.totalorder %s31, 0
      %p70 = por %p68, %p69
      %s71 = ssub.s32 %s32, %s44
      %p72 = scmp.eq.s32.totalorder %s71, 0
      %s74 = sadd.s32 %s73, 1
      %s75 = scalar_select %p72, %s73, %s74
      %p78 = pneg %p72
      %p79 = scmp.eq.s32.totalorder %s25, 3
      %p80 = por %p78, %p79
      %p81 = scmp.ne.s32.totalorder %s73, %s76
      %p82 = scmp.eq.s32.totalorder %s25, 0
      %p83 = por %p81, %p82
      %p84 = scmp.ne.s32.totalorder %s73, %s76
      %p85 = scmp.eq.s32.totalorder %s30, 3
      %p86 = por %p84, %p85
      %p87 = scmp.ne.s32.totalorder %s76, %s77
      %p88 = scmp.eq.s32.totalorder %s30, 0
      %p89 = por %p87, %p88
      %p90 = scmp.ne.s32.totalorder %s76, %s77
      %p91 = scmp.eq.s32.totalorder %s31, 3
      %p92 = por %p90, %p91
      %p94 = scmp.ne.s32.totalorder %s77, %s93
      %p95 = scmp.eq.s32.totalorder %s31, 0
      %p96 = por %p94, %p95
      %s98 = sadd.s32 %s97, 1
      %p101 = scmp.eq.s32.totalorder %s25, 3
      %p102 = scmp.ne.s32.totalorder %s97, %s99
      %p103 = scmp.eq.s32.totalorder %s25, 0
      %p104 = por %p102, %p103
      %p105 = scmp.ne.s32.totalorder %s97, %s99
      %p106 = scmp.eq.s32.totalorder %s30, 3
      %p107 = por %p105, %p106
      %p108 = scmp.ne.s32.totalorder %s99, %s100
      %p109 = scmp.eq.s32.totalorder %s30, 0
      %p110 = por %p108, %p109
      %p111 = scmp.ne.s32.totalorder %s99, %s100
      %p112 = scmp.eq.s32.totalorder %s31, 3
      %p113 = por %p111, %p112
      %p115 = scmp.ne.s32.totalorder %s100, %s114
      %p116 = scmp.eq.s32.totalorder %s31, 0
      %p117 = por %p115, %p116
      %s119 = sadd.s32 %s118, 1
      %p122 = scmp.eq.s32.totalorder %s25, 3
      %p123 = scmp.ne.s32.totalorder %s118, %s120
      %p124 = scmp.eq.s32.totalorder %s25, 0
      %p125 = por %p123, %p124
      %p126 = scmp.ne.s32.totalorder %s118, %s120
      %p127 = scmp.eq.s32.totalorder %s30, 3
      %p128 = por %p126, %p127
      %p129 = scmp.ne.s32.totalorder %s120, %s121
      %p130 = scmp.eq.s32.totalorder %s30, 0
      %p131 = por %p129, %p130
      %p132 = scmp.ne.s32.totalorder %s120, %s121
      %p133 = scmp.eq.s32.totalorder %s31, 3
      %p134 = por %p132, %p133
      %p136 = scmp.ne.s32.totalorder %s121, %s135
      %p137 = scmp.eq.s32.totalorder %s31, 0
      %p138 = por %p136, %p137
      %s139 = ssub.s32 %s33, %s40
      %p140 = scmp.eq.s32.totalorder %s139, 0
      %s142 = sadd.s32 %s141, 1
      %s143 = scalar_select %p140, %s141, %s142
      %p146 = pneg %p140
      %p147 = scmp.eq.s32.totalorder %s25, 3
      %p148 = por %p146, %p147
      %p149 = scmp.ne.s32.totalorder %s141, %s144
      %p150 = scmp.eq.s32.totalorder %s25, 0
      %p151 = por %p149, %p150
      %p152 = scmp.ne.s32.totalorder %s141, %s144
      %p153 = scmp.eq.s32.totalorder %s30, 3
      %p154 = por %p152, %p153
      %p155 = scmp.ne.s32.totalorder %s144, %s145
      %p156 = scmp.eq.s32.totalorder %s30, 0
      %p157 = por %p155, %p156
      %p158 = scmp.ne.s32.totalorder %s144, %s145
      %p159 = scmp.eq.s32.totalorder %s31, 3
      %p160 = por %p158, %p159
      %p162 = scmp.ne.s32.totalorder %s145, %s161
      %p163 = scmp.eq.s32.totalorder %s31, 0
      %p164 = por %p162, %p163
      %s165 = ssub.s32 %s33, %s40
      %p166 = scmp.eq.s32.totalorder %s165, 0
      %s168 = sadd.s32 %s167, 1
      %s169 = scalar_select %p166, %s167, %s168
      %p172 = pneg %p166
      %p173 = scmp.eq.s32.totalorder %s25, 3
      %p174 = por %p172, %p173
      %p175 = scmp.ne.s32.totalorder %s167, %s170
      %p176 = scmp.eq.s32.totalorder %s25, 0
      %p177 = por %p175, %p176
      %p178 = scmp.ne.s32.totalorder %s167, %s170
      %p179 = scmp.eq.s32.totalorder %s30, 3
      %p180 = por %p178, %p179
      %p181 = scmp.ne.s32.totalorder %s170, %s171
      %p182 = scmp.eq.s32.totalorder %s30, 0
      %p183 = por %p181, %p182
      %p184 = scmp.ne.s32.totalorder %s170, %s171
      %p185 = scmp.eq.s32.totalorder %s31, 3
      %p186 = por %p184, %p185
      %p188 = scmp.ne.s32.totalorder %s171, %s187
      %p189 = scmp.eq.s32.totalorder %s31, 0
      %p190 = por %p188, %p189
      %s191 = ssub.s32 %s33, %s40
      %p192 = scmp.eq.s32.totalorder %s191, 0
      %s194 = sadd.s32 %s193, 1
      %s195 = scalar_select %p192, %s193, %s194
      %p198 = pneg %p192
      %p199 = scmp.eq.s32.totalorder %s25, 3
      %p200 = por %p198, %p199
      %p201 = scmp.ne.s32.totalorder %s193, %s196
      %p202 = scmp.eq.s32.totalorder %s25, 0
      %p203 = por %p201, %p202
      %p204 = scmp.ne.s32.totalorder %s193, %s196
      %p205 = scmp.eq.s32.totalorder %s30, 3
      %p206 = por %p204, %p205
      %p207 = scmp.ne.s32.totalorder %s196, %s197
      %p208 = scmp.eq.s32.totalorder %s30, 0
      %p209 = por %p207, %p208
      %p210 = scmp.ne.s32.totalorder %s196, %s197
      %p211 = scmp.eq.s32.totalorder %s31, 3
      %p212 = por %p210, %p211
      %p214 = scmp.ne.s32.totalorder %s197, %s213
      %p215 = scmp.eq.s32.totalorder %s31, 0
      %p216 = por %p214, %p215
      %s217 = ssub.s32 %s33, %s40
      %p218 = scmp.eq.s32.totalorder %s217, 0
      %s220 = sadd.s32 %s219, 1
      %s221 = scalar_select %p218, %s219, %s220
      %p224 = pneg %p218
      %p225 = scmp.eq.s32.totalorder %s25, 3
      %p226 = por %p224, %p225
      %p227 = scmp.ne.s32.totalorder %s219, %s222
      %p228 = scmp.eq.s32.totalorder %s25, 0
      %p229 = por %p227, %p228
      %p230 = scmp.ne.s32.totalorder %s219, %s222
      %p231 = scmp.eq.s32.totalorder %s30, 3
      %p232 = por %p230, %p231
      %p233 = scmp.ne.s32.totalorder %s222, %s223
      %p234 = scmp.eq.s32.totalorder %s30, 0
      %p235 = por %p233, %p234
      %p236 = scmp.ne.s32.totalorder %s222, %s223
      %p237 = scmp.eq.s32.totalorder %s31, 3
      %p238 = por %p236, %p237
      %p240 = scmp.ne.s32.totalorder %s223, %s239
      %p241 = scmp.eq.s32.totalorder %s31, 0
      %p242 = por %p240, %p241
      %s243 = ssub.s32 %s33, %s40
      %p244 = scmp.eq.s32.totalorder %s243, 0
      %s246 = sadd.s32 %s245, 1
      %s247 = scalar_select %p244, %s245, %s246
      %p250 = pneg %p244
      %p251 = scmp.eq.s32.totalorder %s25, 3
      %p252 = por %p250, %p251
      %p253 = scmp.ne.s32.totalorder %s245, %s248
      %p254 = scmp.eq.s32.totalorder %s25, 0
      %p255 = por %p253, %p254
      %p256 = scmp.ne.s32.totalorder %s245, %s248
      %p257 = scmp.eq.s32.totalorder %s30, 3
      %p258 = por %p256, %p257
      %p259 = scmp.ne.s32.totalorder %s248, %s249
      %p260 = scmp.eq.s32.totalorder %s30, 0
      %p261 = por %p259, %p260
      %p262 = scmp.ne.s32.totalorder %s248, %s249
      %p263 = scmp.eq.s32.totalorder %s31, 3
      %p264 = por %p262, %p263
      %p266 = scmp.ne.s32.totalorder %s249, %s265
      %p267 = scmp.eq.s32.totalorder %s31, 0
      %p268 = por %p266, %p267
      %s269 = ssub.s32 %s33, %s40
      %p270 = scmp.eq.s32.totalorder %s269, 0
      %s272 = sadd.s32 %s271, 1
      %s273 = scalar_select %p270, %s271, %s272
      %p276 = pneg %p270
      %p277 = scmp.eq.s32.totalorder %s25, 3
      %p278 = por %p276, %p277
      %p279 = scmp.ne.s32.totalorder %s271, %s274
      %p280 = scmp.eq.s32.totalorder %s25, 0
      %p281 = por %p279, %p280
      %p282 = scmp.ne.s32.totalorder %s271, %s274
      %p283 = scmp.eq.s32.totalorder %s30, 3
      %p284 = por %p282, %p283
      %p285 = scmp.ne.s32.totalorder %s274, %s275
      %p286 = scmp.eq.s32.totalorder %s30, 0
      %p287 = por %p285, %p286
      %p288 = scmp.ne.s32.totalorder %s274, %s275
      %p289 = scmp.eq.s32.totalorder %s31, 3
      %p290 = por %p288, %p289
      %p292 = scmp.ne.s32.totalorder %s275, %s291
      %p293 = scmp.eq.s32.totalorder %s31, 0
      %p294 = por %p292, %p293
      %s295 = ssub.s32 %s33, %s40
      %p296 = scmp.eq.s32.totalorder %s295, 0
      %s298 = sadd.s32 %s297, 1
      %s299 = scalar_select %p296, %s297, %s298
      %p302 = pneg %p296
      %p303 = scmp.eq.s32.totalorder %s25, 3
      %p304 = por %p302, %p303
      %p305 = scmp.ne.s32.totalorder %s297, %s300
      %p306 = scmp.eq.s32.totalorder %s25, 0
      %p307 = por %p305, %p306
      %p308 = scmp.ne.s32.totalorder %s297, %s300
      %p309 = scmp.eq.s32.totalorder %s30, 3
      %p310 = por %p308, %p309
      %p311 = scmp.ne.s32.totalorder %s300, %s301
      %p312 = scmp.eq.s32.totalorder %s30, 0
      %p313 = por %p311, %p312
      %p314 = scmp.ne.s32.totalorder %s300, %s301
      %p315 = scmp.eq.s32.totalorder %s31, 3
      %p316 = por %p314, %p315
      %p318 = scmp.ne.s32.totalorder %s301, %s317
      %p319 = scmp.eq.s32.totalorder %s31, 0
      %p320 = por %p318, %p319
      %s321 = ssub.s32 %s33, %s40
      %p322 = scmp.eq.s32.totalorder %s321, 0
      %s324 = sadd.s32 %s323, 1
      %s325 = scalar_select %p322, %s323, %s324
      %p328 = pneg %p322
      %p329 = scmp.eq.s32.totalorder %s25, 3
      %p330 = por %p328, %p329
      %p331 = scmp.ne.s32.totalorder %s323, %s326
      %p332 = scmp.eq.s32.totalorder %s25, 0
      %p333 = por %p331, %p332
      %p334 = scmp.ne.s32.totalorder %s323, %s326
      %p335 = scmp.eq.s32.totalorder %s30, 3
      %p336 = por %p334, %p335
      %p337 = scmp.ne.s32.totalorder %s326, %s327
      %p338 = scmp.eq.s32.totalorder %s30, 0
      %p339 = por %p337, %p338
      %p340 = scmp.ne.s32.totalorder %s326, %s327
      %p341 = scmp.eq.s32.totalorder %s31, 3
      %p342 = por %p340, %p341
      %p344 = scmp.ne.s32.totalorder %s327, %s343
      %p345 = scmp.eq.s32.totalorder %s31, 0
      %p346 = por %p344, %p345
      %s347 = ssub.s32 %s33, %s40
      %p348 = scmp.eq.s32.totalorder %s347, 0
      %s350 = sadd.s32 %s349, 1
      %s351 = scalar_select %p348, %s349, %s350
      %p354 = pneg %p348
      %p355 = scmp.eq.s32.totalorder %s25, 3
      %p356 = por %p354, %p355
      %p357 = scmp.ne.s32.totalorder %s349, %s352
      %p358 = scmp.eq.s32.totalorder %s25, 0
      %p359 = por %p357, %p358
      %p360 = scmp.ne.s32.totalorder %s349, %s352
      %p361 = scmp.eq.s32.totalorder %s30, 3
      %p362 = por %p360, %p361
      %p363 = scmp.ne.s32.totalorder %s352, %s353
      %p364 = scmp.eq.s32.totalorder %s30, 0
      %p365 = por %p363, %p364
      %p366 = scmp.ne.s32.totalorder %s352, %s353
      %p367 = scmp.eq.s32.totalorder %s31, 3
      %p368 = por %p366, %p367
      %p370 = scmp.ne.s32.totalorder %s353, %s369
      %p371 = scmp.eq.s32.totalorder %s31, 0
      %p372 = por %p370, %p371
      %s373 = ssub.s32 %s33, %s40
      %p374 = scmp.eq.s32.totalorder %s373, 0
      %s376 = sadd.s32 %s375, 1
      %s377 = scalar_select %p374, %s375, %s376
      %p380 = pneg %p374
      %p381 = scmp.eq.s32.totalorder %s25, 3
      %p382 = por %p380, %p381
      %p383 = scmp.ne.s32.totalorder %s375, %s378
      %p384 = scmp.eq.s32.totalorder %s25, 0
      %p385 = por %p383, %p384
      %p386 = scmp.ne.s32.totalorder %s375, %s378
      %p387 = scmp.eq.s32.totalorder %s30, 3
      %p388 = por %p386, %p387
      %p389 = scmp.ne.s32.totalorder %s378, %s379
      %p390 = scmp.eq.s32.totalorder %s30, 0
      %p391 = por %p389, %p390
      %p392 = scmp.ne.s32.totalorder %s378, %s379
      %p393 = scmp.eq.s32.totalorder %s31, 3
      %p394 = por %p392, %p393
      %p396 = scmp.ne.s32.totalorder %s379, %s395
      %p397 = scmp.eq.s32.totalorder %s31, 0
      %p398 = por %p396, %p397
      %s399 = ssub.s32 %s33, %s40
      %p400 = scmp.eq.s32.totalorder %s399, 0
      %s402 = sadd.s32 %s401, 1
      %s403 = scalar_select %p400, %s401, %s402
      %p406 = pneg %p400
      %p407 = scmp.eq.s32.totalorder %s25, 3
      %p408 = por %p406, %p407
      %p409 = scmp.ne.s32.totalorder %s401, %s404
      %p410 = scmp.eq.s32.totalorder %s25, 0
      %p411 = por %p409, %p410
      %p412 = scmp.ne.s32.totalorder %s401, %s404
      %p413 = scmp.eq.s32.totalorder %s30, 3
      %p414 = por %p412, %p413
      %p415 = scmp.ne.s32.totalorder %s404, %s405
      %p416 = scmp.eq.s32.totalorder %s30, 0
      %p417 = por %p415, %p416
      %p418 = scmp.ne.s32.totalorder %s404, %s405
      %p419 = scmp.eq.s32.totalorder %s31, 3
      %p420 = por %p418, %p419
      %p422 = scmp.ne.s32.totalorder %s405, %s421
      %p423 = scmp.eq.s32.totalorder %s31, 0
      %p424 = por %p422, %p423
      %s425 = ssub.s32 %s33, %s40
      %p426 = scmp.eq.s32.totalorder %s425, 0
      %s428 = sadd.s32 %s427, 1
      %s429 = scalar_select %p426, %s427, %s428
      %p432 = pneg %p426
      %p433 = scmp.eq.s32.totalorder %s25, 3
      %p434 = por %p432, %p433
      %p435 = scmp.ne.s32.totalorder %s427, %s430
      %p436 = scmp.eq.s32.totalorder %s25, 0
      %p437 = por %p435, %p436
      %p438 = scmp.ne.s32.totalorder %s427, %s430
      %p439 = scmp.eq.s32.totalorder %s30, 3
      %p440 = por %p438, %p439
      %p441 = scmp.ne.s32.totalorder %s430, %s431
      %p442 = scmp.eq.s32.totalorder %s30, 0
      %p443 = por %p441, %p442
      %p444 = scmp.ne.s32.totalorder %s430, %s431
      %p445 = scmp.eq.s32.totalorder %s31, 3
      %p446 = por %p444, %p445
      %p448 = scmp.ne.s32.totalorder %s431, %s447
      %p449 = scmp.eq.s32.totalorder %s31, 0
      %p450 = por %p448, %p449
      %s451 = ssub.s32 %s32, %s44
      %p452 = scmp.eq.s32.totalorder %s451, 0
      %s454 = sadd.s32 %s453, 1
      %s455 = scalar_select %p452, %s453, %s454
      %p458 = pneg %p452
      %p459 = scmp.eq.s32.totalorder %s25, 3
      %p460 = por %p458, %p459
      %p461 = scmp.ne.s32.totalorder %s453, %s456
      %p462 = scmp.eq.s32.totalorder %s25, 0
      %p463 = por %p461, %p462
      %p464 = scmp.ne.s32.totalorder %s453, %s456
      %p465 = scmp.eq.s32.totalorder %s30, 3
      %p466 = por %p464, %p465
      %p467 = scmp.ne.s32.totalorder %s456, %s457
      %p468 = scmp.eq.s32.totalorder %s30, 0
      %p469 = por %p467, %p468
      %p470 = scmp.ne.s32.totalorder %s456, %s457
      %p471 = scmp.eq.s32.totalorder %s31, 3
      %p472 = por %p470, %p471
      %p474 = scmp.ne.s32.totalorder %s457, %s473
      %p475 = scmp.eq.s32.totalorder %s31, 0
      %p476 = por %p474, %p475
      %p477 = scmp.le.s32.totalorder 1, %s25
      %p478 = scmp.lt.s32.totalorder %s25, 5
      %p479 = pnand %p477, %p478
      %p480 = pneg %p479
      // Predicated region
      $region9: #{_lambda_.1} parent=5 // pred_check
        _
      $region10: #{_lambda_.1} parent=5 // pred_check_branch
        %482 = sbr.rel (%p479) target = $region12
      $region11: #{_lambda_.1} parent=5 // pred_region
        %s483 = ssub.s32 %s25, 1
        // Predicated region
        $region13: #{_lambda_.1} parent=11 // pred_check
          %p484 = pneg %p110
        $region14: #{_lambda_.1} parent=11 // pred_check_branch
          %486 = sbr.rel (%p484) target = $region16
        $region15: #{_lambda_.1} parent=11 // pred_region
          _
        $region16: #{_lambda_.1} parent=11 // pred_fallthru
          _
        // Predicated region
        $region17: #{_lambda_.1} parent=11 // pred_check
          %p487 = pneg %p131
        $region18: #{_lambda_.1} parent=11 // pred_check_branch
          %489 = sbr.rel (%p487) target = $region20
        $region19: #{_lambda_.1} parent=11 // pred_region
          _
        $region20: #{_lambda_.1} parent=11 // pred_fallthru
          _
      $region12: #{_lambda_.1} parent=5 // pred_fallthru
        _
      %p490 = scmp.lt.s32.totalorder %s25, 4
      // Predicated region
      $region21: #{_lambda_.1} parent=5 // pred_check
        %p491 = pneg %p490
      $region22: #{_lambda_.1} parent=5 // pred_check_branch
        %493 = sbr.rel (%p491) target = $region24
      $region23: #{_lambda_.1} parent=5 // pred_region
        // Predicated region
        $region25: #{_lambda_.1} parent=23 // pred_check
          %p494 = pneg %p57
        $region26: #{_lambda_.1} parent=23 // pred_check_branch
          %496 = sbr.rel (%p494) target = $region28
        $region27: #{_lambda_.1} parent=23 // pred_region
          %s497 = smul.u32 2, %s32
          %p498 = scmp.lt.s32.totalorder %s497, 3
          %s499 = scalar_select %p498, %s497, 3
          %s500 = smul.addr %s499, 8
          %s501 = scalar_lea.vmem %s0, %s500
          %s502 = smul.u32 2, %s32
        $region28: #{_lambda_.1} parent=23 // pred_fallthru
          _
        // Predicated region
        $region29: #{_lambda_.1} parent=23 // pred_check
          %p503 = pneg %p83
        $region30: #{_lambda_.1} parent=23 // pred_check_branch
          %505 = sbr.rel (%p503) target = $region32
        $region31: #{_lambda_.1} parent=23 // pred_region
          %s506 = smul.u32 2, %s32
          %p507 = scmp.lt.s32.totalorder %s506, 3
          %s508 = scalar_select %p507, %s506, 3
          %s509 = scalar_lea.vmem %s1, %s508
          %s510 = smul.u32 2, %s32
        $region32: #{_lambda_.1} parent=23 // pred_fallthru
          _
        // Predicated region
        $region33: #{_lambda_.1} parent=23 // pred_check
          %p511 = pneg %p151
        $region34: #{_lambda_.1} parent=23 // pred_check_branch
          %513 = sbr.rel (%p511) target = $region36
        $region35: #{_lambda_.1} parent=23 // pred_region
          %p514 = scmp.lt.s32.totalorder %s33, 1
          %s515 = scalar_select %p514, %s33, 1
          %s516 = smul.addr %s515, 4
          %s517 = smul.addr %s516, 4
          %s518 = scalar_lea.vmem %s4, %s517
        $region36: #{_lambda_.1} parent=23 // pred_fallthru
          _
        // Predicated region
        $region37: #{_lambda_.1} parent=23 // pred_check
          %p519 = pneg %p177
        $region38: #{_lambda_.1} parent=23 // pred_check_branch
          %521 = sbr.rel (%p519) target = $region40
        $region39: #{_lambda_.1} parent=23 // pred_region
          %p522 = scmp.lt.s32.totalorder %s33, 1
          %s523 = scalar_select %p522, %s33, 1
          %s524 = scalar_lea.vmem %s5, %s523
        $region40: #{_lambda_.1} parent=23 // pred_fallthru
          _
        // Predicated region
        $region41: #{_lambda_.1} parent=23 // pred_check
          %p525 = pneg %p203
        $region42: #{_lambda_.1} parent=23 // pred_check_branch
          %527 = sbr.rel (%p525) target = $region44
        $region43: #{_lambda_.1} parent=23 // pred_region
          %p528 = scmp.lt.s32.totalorder %s33, 1
          %s529 = scalar_select %p528, %s33, 1
          %s530 = smul.addr %s529, 4
          %s531 = smul.addr %s530, 4
          %s532 = scalar_lea.vmem %s6, %s531
        $region44: #{_lambda_.1} parent=23 // pred_fallthru
          _
        // Predicated region
        $region45: #{_lambda_.1} parent=23 // pred_check
          %p533 = pneg %p229
        $region46: #{_lambda_.1} parent=23 // pred_check_branch
          %535 = sbr.rel (%p533) target = $region48
        $region47: #{_lambda_.1} parent=23 // pred_region
          %p536 = scmp.lt.s32.totalorder %s33, 1
          %s537 = scalar_select %p536, %s33, 1
          %s538 = scalar_lea.vmem %s7, %s537
        $region48: #{_lambda_.1} parent=23 // pred_fallthru
          _
        // Predicated region
        $region49: #{_lambda_.1} parent=23 // pred_check
          %p539 = pneg %p255
        $region50: #{_lambda_.1} parent=23 // pred_check_branch
          %541 = sbr.rel (%p539) target = $region52
        $region51: #{_lambda_.1} parent=23 // pred_region
          %p542 = scmp.lt.s32.totalorder %s33, 1
          %s543 = scalar_select %p542, %s33, 1
          %s544 = scalar_lea.vmem %s8, %s543
        $region52: #{_lambda_.1} parent=23 // pred_fallthru
          _
        // Predicated region
        $region53: #{_lambda_.1} parent=23 // pred_check
          %p545 = pneg %p281
        $region54: #{_lambda_.1} parent=23 // pred_check_branch
          %547 = sbr.rel (%p545) target = $region56
        $region55: #{_lambda_.1} parent=23 // pred_region
          %p548 = scmp.lt.s32.totalorder %s33, 1
          %s549 = scalar_select %p548, %s33, 1
          %s550 = scalar_lea.vmem %s9, %s549
        $region56: #{_lambda_.1} parent=23 // pred_fallthru
          _
        // Predicated region
        $region57: #{_lambda_.1} parent=23 // pred_check
          %p551 = pneg %p307
        $region58: #{_lambda_.1} parent=23 // pred_check_branch
          %553 = sbr.rel (%p551) target = $region60
        $region59: #{_lambda_.1} parent=23 // pred_region
          %p554 = scmp.lt.s32.totalorder %s33, 1
          %s555 = scalar_select %p554, %s33, 1
          %s556 = smul.addr %s555, 4
          %s557 = smul.addr %s556, 4
          %s558 = scalar_lea.vmem %s10, %s557
        $region60: #{_lambda_.1} parent=23 // pred_fallthru
          _
        // Predicated region
        $region61: #{_lambda_.1} parent=23 // pred_check
          %p559 = pneg %p333
        $region62: #{_lambda_.1} parent=23 // pred_check_branch
          %561 = sbr.rel (%p559) target = $region64
        $region63: #{_lambda_.1} parent=23 // pred_region
          %p562 = scmp.lt.s32.totalorder %s33, 1
          %s563 = scalar_select %p562, %s33, 1
          %s564 = scalar_lea.vmem %s11, %s563
        $region64: #{_lambda_.1} parent=23 // pred_fallthru
          _
        // Predicated region
        $region65: #{_lambda_.1} parent=23 // pred_check
          %p565 = pneg %p359
        $region66: #{_lambda_.1} parent=23 // pred_check_branch
          %567 = sbr.rel (%p565) target = $region68
        $region67: #{_lambda_.1} parent=23 // pred_region
          %p568 = scmp.lt.s32.totalorder %s33, 1
          %s569 = scalar_select %p568, %s33, 1
          %s570 = smul.addr %s569, 16
          %s571 = smul.addr %s570, 4
          %s572 = scalar_lea.vmem %s12, %s571
        $region68: #{_lambda_.1} parent=23 // pred_fallthru
          _
        // Predicated region
        $region69: #{_lambda_.1} parent=23 // pred_check
          %p573 = pneg %p385
        $region70: #{_lambda_.1} parent=23 // pred_check_branch
          %575 = sbr.rel (%p573) target = $region72
        $region71: #{_lambda_.1} parent=23 // pred_region
          %p576 = scmp.lt.s32.totalorder %s33, 1
          %s577 = scalar_select %p576, %s33, 1
          %s578 = scalar_lea.vmem %s13, %s577
        $region72: #{_lambda_.1} parent=23 // pred_fallthru
          _
        // Predicated region
        $region73: #{_lambda_.1} parent=23 // pred_check
          %p579 = pneg %p411
        $region74: #{_lambda_.1} parent=23 // pred_check_branch
          %581 = sbr.rel (%p579) target = $region76
        $region75: #{_lambda_.1} parent=23 // pred_region
          %p582 = scmp.lt.s32.totalorder %s33, 1
          %s583 = scalar_select %p582, %s33, 1
          %s584 = scalar_lea.vmem %s14, %s583
        $region76: #{_lambda_.1} parent=23 // pred_fallthru
          _
        // Predicated region
        $region77: #{_lambda_.1} parent=23 // pred_check
          %p585 = pneg %p437
        $region78: #{_lambda_.1} parent=23 // pred_check_branch
          %587 = sbr.rel (%p585) target = $region80
        $region79: #{_lambda_.1} parent=23 // pred_region
          %p588 = scmp.lt.s32.totalorder %s33, 1
          %s589 = scalar_select %p588, %s33, 1
          %s590 = scalar_lea.vmem %s15, %s589
        $region80: #{_lambda_.1} parent=23 // pred_fallthru
          _
      $region24: #{_lambda_.1} parent=5 // pred_fallthru
        _
      %p591 = scmp.le.s32.totalorder 1, %s25
      %p592 = scmp.lt.s32.totalorder %s25, 5
      %p593 = pnand %p591, %p592
      %p594 = pneg %p593
      // Predicated region
      $region81: #{_lambda_.1} parent=5 // pred_check
        _
      $region82: #{_lambda_.1} parent=5 // pred_check_branch
        %596 = sbr.rel (%p593) target = $region84
      $region83: #{_lambda_.1} parent=5 // pred_region
        %s597 = ssub.s32 %s25, 1
        %s598 = smul.u32 2, %s34
        %p599 = scmp.lt.s32.totalorder %s598, 3
        %s600 = scalar_select %p599, %s598, 3
        %s601 = smul.addr %s600, 8
        %s602 = scalar_lea.vmem %s0, %s601
        %p603 = pneg %p63
        %p604 = pneg %p60
        %s605 = smul.u32 2, %s34
        %p606 = scmp.lt.s32.totalorder %s605, 3
        %s607 = scalar_select %p606, %s605, 3
        %s608 = scalar_lea.vmem %s1, %s607
        %p609 = pneg %p89
        %p610 = pneg %p86
        %p611 = pneg %p110
        %p612 = pneg %p107
        %p613 = pneg %p131
        %p614 = pneg %p128
        %p615 = scmp.lt.s32.totalorder %s35, 1
        %s616 = scalar_select %p615, %s35, 1
        %s617 = smul.addr %s616, 4
        %s618 = smul.addr %s617, 4
        %s619 = scalar_lea.vmem %s4, %s618
        %p620 = pneg %p157
        %p621 = pneg %p154
        %p622 = scmp.lt.s32.totalorder %s35, 1
        %s623 = scalar_select %p622, %s35, 1
        %s624 = scalar_lea.vmem %s5, %s623
        %p625 = pneg %p183
        %p626 = pneg %p180
        %p627 = scmp.lt.s32.totalorder %s35, 1
        %s628 = scalar_select %p627, %s35, 1
        %s629 = smul.addr %s628, 4
        %s630 = smul.addr %s629, 4
        %s631 = scalar_lea.vmem %s6, %s630
        %p632 = pneg %p209
        %p633 = pneg %p206
        %p634 = scmp.lt.s32.totalorder %s35, 1
        %s635 = scalar_select %p634, %s35, 1
        %s636 = scalar_lea.vmem %s7, %s635
        %p637 = pneg %p235
        %p638 = pneg %p232
        %p639 = scmp.lt.s32.totalorder %s35, 1
        %s640 = scalar_select %p639, %s35, 1
        %s641 = scalar_lea.vmem %s8, %s640
        %p642 = pneg %p261
        %p643 = pneg %p258
        %p644 = scmp.lt.s32.totalorder %s35, 1
        %s645 = scalar_select %p644, %s35, 1
        %s646 = scalar_lea.vmem %s9, %s645
        %p647 = pneg %p287
        %p648 = pneg %p284
        %p649 = scmp.lt.s32.totalorder %s35, 1
        %s650 = scalar_select %p649, %s35, 1
        %s651 = smul.addr %s650, 4
        %s652 = smul.addr %s651, 4
        %s653 = scalar_lea.vmem %s10, %s652
        %p654 = pneg %p313
        %p655 = pneg %p310
        %p656 = scmp.lt.s32.totalorder %s35, 1
        %s657 = scalar_select %p656, %s35, 1
        %s658 = scalar_lea.vmem %s11, %s657
        %p659 = pneg %p339
        %p660 = pneg %p336
        %p661 = scmp.lt.s32.totalorder %s35, 1
        %s662 = scalar_select %p661, %s35, 1
        %s663 = smul.addr %s662, 16
        %s664 = smul.addr %s663, 4
        %s665 = scalar_lea.vmem %s12, %s664
        %p666 = pneg %p365
        %p667 = pneg %p362
        %p668 = scmp.lt.s32.totalorder %s35, 1
        %s669 = scalar_select %p668, %s35, 1
        %s670 = scalar_lea.vmem %s13, %s669
        %p671 = pneg %p391
        %p672 = pneg %p388
        %p673 = scmp.lt.s32.totalorder %s35, 1
        %s674 = scalar_select %p673, %s35, 1
        %s675 = scalar_lea.vmem %s14, %s674
        %p676 = pneg %p417
        %p677 = pneg %p414
        %p678 = scmp.lt.s32.totalorder %s35, 1
        %s679 = scalar_select %p678, %s35, 1
        %s680 = scalar_lea.vmem %s15, %s679
        %p681 = pneg %p443
        %p682 = pneg %p440
        %p683 = pneg %p469
        %p684 = pneg %p466
        %s685 = sand.u32 %s456, 1
        %s686 = scalar_lea.sflag [#allocation6], %s685
        %s687 = sand.u32 %s456, 1
        %s688 = smul.addr %s687, 2
        %s689 = scalar_lea.vmem [#allocation5], %s688
        %s690 = smul.u32 2, %s34
        %p691 = scmp.lt.s32.totalorder %s690, 3
        %s692 = scalar_select %p691, %s690, 3
        %s693 = smul.addr %s692, 8
        %s694 = scalar_lea.vmem %s0, %s693
        %s695 = smul.u32 2, %s34
        %s696 = smul.u32 2, %s34
        %p697 = scmp.lt.s32.totalorder %s696, 3
        %s698 = scalar_select %p697, %s696, 3
        %s699 = scalar_lea.vmem %s1, %s698
        %s700 = smul.u32 2, %s34
        %p701 = scmp.lt.s32.totalorder %s35, 1
        %s702 = scalar_select %p701, %s35, 1
        %s703 = smul.addr %s702, 4
        %s704 = smul.addr %s703, 4
        %s705 = scalar_lea.vmem %s4, %s704
        %p706 = scmp.lt.s32.totalorder %s35, 1
        %s707 = scalar_select %p706, %s35, 1
        %s708 = scalar_lea.vmem %s5, %s707
        %p709 = scmp.lt.s32.totalorder %s35, 1
        %s710 = scalar_select %p709, %s35, 1
        %s711 = smul.addr %s710, 4
        %s712 = smul.addr %s711, 4
        %s713 = scalar_lea.vmem %s6, %s712
        %p714 = scmp.lt.s32.totalorder %s35, 1
        %s715 = scalar_select %p714, %s35, 1
        %s716 = scalar_lea.vmem %s7, %s715
        %p717 = scmp.lt.s32.totalorder %s35, 1
        %s718 = scalar_select %p717, %s35, 1
        %s719 = scalar_lea.vmem %s8, %s718
        %p720 = scmp.lt.s32.totalorder %s35, 1
        %s721 = scalar_select %p720, %s35, 1
        %s722 = scalar_lea.vmem %s9, %s721
        %p723 = scmp.lt.s32.totalorder %s35, 1
        %s724 = scalar_select %p723, %s35, 1
        %s725 = smul.addr %s724, 4
        %s726 = smul.addr %s725, 4
        %s727 = scalar_lea.vmem %s10, %s726
        %p728 = scmp.lt.s32.totalorder %s35, 1
        %s729 = scalar_select %p728, %s35, 1
        %s730 = scalar_lea.vmem %s11, %s729
        %p731 = scmp.lt.s32.totalorder %s35, 1
        %s732 = scalar_select %p731, %s35, 1
        %s733 = smul.addr %s732, 16
        %s734 = smul.addr %s733, 4
        %s735 = scalar_lea.vmem %s12, %s734
        %p736 = scmp.lt.s32.totalorder %s35, 1
        %s737 = scalar_select %p736, %s35, 1
        %s738 = scalar_lea.vmem %s13, %s737
        %p739 = scmp.lt.s32.totalorder %s35, 1
        %s740 = scalar_select %p739, %s35, 1
        %s741 = scalar_lea.vmem %s14, %s740
        %p742 = scmp.lt.s32.totalorder %s35, 1
        %s743 = scalar_select %p742, %s35, 1
        %s744 = scalar_lea.vmem %s15, %s743
        %s745 = smul.u32 2, %s34
        %p747 = scmp.eq.s32.totalorder %s35, 0
        // Predicated region
        $region85: #{_lambda_.1} parent=83 // pred_check
          %p748 = pneg %p747
        $region86: #{_lambda_.1} parent=83 // pred_check_branch
          %750 = sbr.rel (%p748) target = $region88
        $region87: #{_lambda_.1} parent=83 // pred_region
          %v751 = vld [vmem:[%s694] sm:$0xff]
          %v752 = vld [vmem:[%s694 + $0x8] sm:$0xff]
          %v753 = vld [vmem:[%s2] sm:$0x1]
          %v754 = vld [vmem:[%s3] sm:$0x1]
          %vm755 = vcmask 261120
          %v756 = vsel %vm755, %v751, 0.0
          %757 = vadd.xlane.f32.xlu0 %v756
          %v758 = vpop.xlane.xlu0 %757
          %v759 = vsel %vm755, %v752, 0.0
          %760 = vadd.xlane.f32.xlu0 %v759
          %v761 = vpop.xlane.xlu0 %760
          %v762 = vrcp.pop 32.0
          %v763 = vmul.f32 32.0, %v762
          %v764 = vsub.f32 1.0, %v763
          %v765 = vmul.f32 %v762, %v764
          %v766 = vadd.f32 %v762, %v765
          %vm767 = vweird.f32 %v762
          %v768 = vsel %vm767, %v762, %v766
          %v769 = vmul.f32 %v758, %v768
          %v770 = vmul.f32 %v761, %v768
          %v771 = vsub.f32 %v751, %v769
          %v772 = vsub.f32 %v752, %v770
          %v773 = vmul.f32 %v771, %v771
          %v774 = vmul.f32 %v772, %v772
          %v775 = vsel %vm755, %v773, 0.0
          %776 = vadd.xlane.f32.xlu0 %v775
          %v777 = vpop.xlane.xlu0 %776
          %v778 = vsel %vm755, %v774, 0.0
          %779 = vadd.xlane.f32.xlu0 %v778
          %v780 = vpop.xlane.xlu0 %779
          %v781 = vmul.f32 %v777, %v768
          %v782 = vmul.f32 %v780, %v768
          %v783 = vadd.f32 %v781, 1e-05
          %v784 = vadd.f32 %v782, 1e-05
          %v785 = vrsqrt.pop %v783
          %v786 = vmul.f32 %v785, %v783
          %v787 = vmul.f32 %v786, %v785
          %v788 = vmul.f32 0.5, %v787
          %v789 = vsub.f32 1.5, %v788
          %v790 = vmul.f32 %v785, %v789
          %vm791 = vweird.f32 %v783
          %vm792 = vweird.f32 %v785
          %vm793 = vmor %vm791, %vm792
          %v794 = vsel %vm793, %v785, %v790
          %v795 = vrsqrt.pop %v784
          %v796 = vmul.f32 %v795, %v784
          %v797 = vmul.f32 %v796, %v795
          %v798 = vmul.f32 0.5, %v797
          %v799 = vsub.f32 1.5, %v798
          %v800 = vmul.f32 %v795, %v799
          %vm801 = vweird.f32 %v784
          %vm802 = vweird.f32 %v795
          %vm803 = vmor %vm801, %vm802
          %v804 = vsel %vm803, %v795, %v800
          %v805 = vmul.f32 %v771, %v794
          %v806 = vmul.f32 %v772, %v804
          %v808 = vperm.slane %v753, 0
          %v810 = vmul.f32 %v805, %v808
          %v811 = vmul.f32 %v806, %v808
          %v813 = vperm.slane %v754, 0
          %v815 = vadd.f32 %v810, %v813
          %v816 = vadd.f32 %v811, %v813
          %817 = vst.msk [vmem:[#allocation2] sm:$0xff] %vm755, %v815
          %818 = vst.msk [vmem:[#allocation2 + $0x8] sm:$0xff] %vm755, %v816
        $region88: #{_lambda_.1} parent=83 // pred_fallthru
          _
        %v819 = vld [vmem:[#allocation2] sm:$0xff]
        %v820 = vld [vmem:[#allocation2 + $0x8] sm:$0xff]
        %v821 = vpack.c.bf16 %v820, %v819
        %v822 = vld [vmem:[%s705] sm:$0xf]
        %v823 = vld [vmem:[%s705 + $0x4] sm:$0xf]
        %v824 = vld [vmem:[%s705 + $0x8] sm:$0xf]
        %v825 = vld [vmem:[%s705 + $0xc] sm:$0xf]
        %v826 = vld [vmem:[%s708] sm:$0x1]
        %v828 = vperm.slane %v826, 0
        %v834 = vunpack.c.l.b16 %v822
        %v835 = vunpack.c.l.b16 %v823
        %v836 = vunpack.c.l.b16 %v824
        %v837 = vunpack.c.l.b16 %v825
        %v838 = vpack.c.b16 %v835, %v834
        %v839 = vpack.c.b16 %v837, %v836
        %vm842 = vcmask 261120
        %v844 = vsel %vm842, %v821, 0
        %846 = vmatpush.bf16.msra.mxu0 0
        %847 = vmatpush.bf16.msra.mxu0 0
        %848 = vmatpush.bf16.msra.mxu0 0
        %849 = vmatpush.bf16.msra.mxu0 0
        %850 = vmatpush.bf16.msra.mxu0 0
        %851 = vmatpush.bf16.msra.mxu0 0
        %852 = vmatpush.bf16.msra.mxu0 %v839
        %853 = vmatpush.bf16.msra.mxu0 %v838
        %854 = vmatmul.bf16.gmra.mxu0 %v844
        %v855 = vpop.f32.mrf.mxu0
        %v856 = vadd.f32 %v828, %v855
        %v857 = vpop.f32.mrf.mxu0
        %v858 = vadd.f32 %v828, %v857
        %859 = vdwg.mxu0
        %v860 = vpack.c.bf16 %v856, %v856
        %v861 = vpack.c.bf16 %v858, %v858
        %vm862 = vcmask 781312
        %863 = vst.msk [vmem:[#allocation3] sm:$0xf] %vm862, %v860
        %864 = vst.msk [vmem:[#allocation3 + $0x4] sm:$0xf] %vm862, %v861
        %v865 = vld [vmem:[%s699] sm:$0x1]
        %v866 = vld [vmem:[#allocation3] sm:$0xf]
        %v868 = vunpack.c.l.b16 %v866
        %v869 = vpack.c.b16 %v868, %v868
        %870 = vrot.lane.b32.xlu0 %v869, 96
        %v871 = vpop.permute.xlu0 %870
        %vm872 = vcmask 130048
        %v874 = vsel %vm872, %v866, 0
        %v877 = vsel %vm872, %v871, 0
        %879 = vmatpush.bf16.xpose.msra.mxu0 0
        %880 = vmatpush.bf16.xpose.msra.mxu0 0
        %881 = vmatpush.bf16.xpose.msra.mxu0 0
        %882 = vmatpush.bf16.xpose.msra.mxu0 0
        %883 = vmatpush.bf16.xpose.msra.mxu0 0
        %884 = vmatpush.bf16.xpose.msra.mxu0 0
        %885 = vmatpush.bf16.xpose.msra.mxu0 0
        %886 = vmatpush.bf16.xpose.msra.mxu0 %v877
        %887 = vmatmul.bf16.gmra.mxu0 %v874
        %v888 = vpop.f32.mrf.mxu0
        %v889 = vadd.f32 0.0, %v888
        %v890 = vpop.f32.mrf.mxu0
        %891 = vdwg.mxu0
        %v892 = vmul.f32 %v889, 0.25
        %v894 = vperm.slane %v865, 0
        %v896 = vadd.f32 %v892, %v894
        %vm897 = vcmask 64512
        %v898 = vsel %vm897, %v896, -inf
        %899 = vmax.xlane.f32.xlu0 %v898
        %v900 = vpop.xlane.xlu0 %899
        %v901 = vsub.f32 %v896, %v900
        %v902 = vmul.f32 %v901, 1.442695
        %v903 = vpow.pop %v902
        %v904 = vsel %vm897, %v903, 0.0
        %905 = vadd.xlane.f32.xlu0 %v904
        %v906 = vpop.xlane.xlu0 %905
        %v907 = vrcp.pop %v906
        %v908 = vmul.f32 %v903, %v907
        %v909 = vpack.c.bf16 %v908, %v908
        %910 = vrot.lane.b32.xlu0 %v869, 64
        %v911 = vpop.permute.xlu0 %910
        %v913 = vsel %vm897, %v909, 0
        %vm915 = vcmask 1043456
        %v917 = vsel %vm915, %v911, 0
        %919 = vmatpush.bf16.msra.mxu0 0
        %920 = vmatpush.bf16.msra.mxu0 0
        %921 = vmatpush.bf16.msra.mxu0 0
        %922 = vmatpush.bf16.msra.mxu0 0
        %923 = vmatpush.bf16.msra.mxu0 0
        %924 = vmatpush.bf16.msra.mxu0 0
        %925 = vmatpush.bf16.msra.mxu0 0
        %926 = vmatpush.bf16.msra.mxu0 %v917
        %927 = vmatmul.bf16.gmra.mxu0 %v913
        %v928 = vpop.f32.mrf.mxu0
        %v929 = vadd.f32 0.0, %v928
        %v930 = vpop.f32.mrf.mxu0
        %931 = vdwg.mxu0
        %v932 = vpack.c.bf16 %v929, %v929
        %vm933 = vcmask 125952
        %934 = vst.msk [vmem:[#allocation4] sm:$0xf] %vm933, %v932
        %v935 = vld [vmem:[#allocation3] sm:$0xf]
        %v937 = vunpack.c.l.b16 %v935
        %v938 = vpack.c.b16 %v937, %v937
        %939 = vrot.lane.b32.xlu0 %v938, 112
        %v940 = vpop.permute.xlu0 %939
        %941 = vrot.lane.b32.xlu0 %v938, 80
        %v942 = vpop.permute.xlu0 %941
        %v944 = vsel %vm872, %v940, 0
        %v947 = vsel %vm872, %v942, 0
        %949 = vmatpush.bf16.xpose.msra.mxu0 0
        %950 = vmatpush.bf16.xpose.msra.mxu0 0
        %951 = vmatpush.bf16.xpose.msra.mxu0 0
        %952 = vmatpush.bf16.xpose.msra.mxu0 0
        %953 = vmatpush.bf16.xpose.msra.mxu0 0
        %954 = vmatpush.bf16.xpose.msra.mxu0 0
        %955 = vmatpush.bf16.xpose.msra.mxu0 0
        %956 = vmatpush.bf16.xpose.msra.mxu0 %v947
        %957 = vmatmul.bf16.gmra.mxu0 %v944
        %v958 = vpop.f32.mrf.mxu0
        %v959 = vadd.f32 0.0, %v958
        %v960 = vpop.f32.mrf.mxu0
        %961 = vdwg.mxu0
        %v962 = vmul.f32 %v959, 0.25
        %v963 = vadd.f32 %v962, %v894
        %v964 = vsel %vm897, %v963, -inf
        %965 = vmax.xlane.f32.xlu0 %v964
        %v966 = vpop.xlane.xlu0 %965
        %v967 = vsub.f32 %v963, %v966
        %v968 = vmul.f32 %v967, 1.442695
        %v969 = vpow.pop %v968
        %v970 = vsel %vm897, %v969, 0.0
        %971 = vadd.xlane.f32.xlu0 %v970
        %v972 = vpop.xlane.xlu0 %971
        %v973 = vrcp.pop %v972
        %v974 = vmul.f32 %v969, %v973
        %v975 = vpack.c.bf16 %v974, %v974
        %976 = vrot.lane.b32.xlu0 %v938, 48
        %v977 = vpop.permute.xlu0 %976
        %v979 = vsel %vm897, %v975, 0
        %v982 = vsel %vm915, %v977, 0
        %984 = vmatpush.bf16.msra.mxu0 0
        %985 = vmatpush.bf16.msra.mxu0 0
        %986 = vmatpush.bf16.msra.mxu0 0
        %987 = vmatpush.bf16.msra.mxu0 0
        %988 = vmatpush.bf16.msra.mxu0 0
        %989 = vmatpush.bf16.msra.mxu0 0
        %990 = vmatpush.bf16.msra.mxu0 0
        %991 = vmatpush.bf16.msra.mxu0 %v982
        %992 = vmatmul.bf16.gmra.mxu0 %v979
        %v993 = vpop.f32.mrf.mxu0
        %v994 = vadd.f32 0.0, %v993
        %v995 = vpop.f32.mrf.mxu0
        %996 = vdwg.mxu0
        %v997 = vpack.c.bf16 %v994, %v994
        %999 = vrot.lane.b32.xlu0 %v997, 16
        %v1000 = vpop.permute.xlu0 %999
        %vm1002 = vcmask 257152
        %1003 = vst.msk [vmem:[#allocation4] sm:$0xf] %vm1002, %v1000
        %s1004 = scalar_lea.vmem %s699, 1
        %v1005 = vld [vmem:[%s1004] sm:$0x1]
        %v1006 = vld [vmem:[#allocation3 + $0x4] sm:$0xf]
        %v1008 = vunpack.c.l.b16 %v1006
        %v1009 = vpack.c.b16 %v1008, %v1008
        %1010 = vrot.lane.b32.xlu0 %v1009, 96
        %v1011 = vpop.permute.xlu0 %1010
        %v1013 = vsel %vm872, %v1006, 0
        %v1016 = vsel %vm872, %v1011, 0
        %1018 = vmatpush.bf16.xpose.msra.mxu0 0
        %1019 = vmatpush.bf16.xpose.msra.mxu0 0
        %1020 = vmatpush.bf16.xpose.msra.mxu0 0
        %1021 = vmatpush.bf16.xpose.msra.mxu0 0
        %1022 = vmatpush.bf16.xpose.msra.mxu0 0
        %1023 = vmatpush.bf16.xpose.msra.mxu0 0
        %1024 = vmatpush.bf16.xpose.msra.mxu0 0
        %1025 = vmatpush.bf16.xpose.msra.mxu0 %v1016
        %1026 = vmatmul.bf16.gmra.mxu0 %v1013
        %v1027 = vpop.f32.mrf.mxu0
        %v1028 = vadd.f32 0.0, %v1027
        %v1029 = vpop.f32.mrf.mxu0
        %1030 = vdwg.mxu0
        %v1031 = vmul.f32 %v1028, 0.25
        %v1033 = vperm.slane %v1005, 0
        %v1035 = vadd.f32 %v1031, %v1033
        %v1036 = vsel %vm897, %v1035, -inf
        %1037 = vmax.xlane.f32.xlu0 %v1036
        %v1038 = vpop.xlane.xlu0 %1037
        %v1039 = vsub.f32 %v1035, %v1038
        %v1040 = vmul.f32 %v1039, 1.442695
        %v1041 = vpow.pop %v1040
        %v1042 = vsel %vm897, %v1041, 0.0
        %1043 = vadd.xlane.f32.xlu0 %v1042
        %v1044 = vpop.xlane.xlu0 %1043
        %v1045 = vrcp.pop %v1044
        %v1046 = vmul.f32 %v1041, %v1045
        %v1047 = vpack.c.bf16 %v1046, %v1046
        %1048 = vrot.lane.b32.xlu0 %v1009, 64
        %v1049 = vpop.permute.xlu0 %1048
        %v1051 = vsel %vm897, %v1047, 0
        %v1054 = vsel %vm915, %v1049, 0
        %1056 = vmatpush.bf16.msra.mxu0 0
        %1057 = vmatpush.bf16.msra.mxu0 0
        %1058 = vmatpush.bf16.msra.mxu0 0
        %1059 = vmatpush.bf16.msra.mxu0 0
        %1060 = vmatpush.bf16.msra.mxu0 0
        %1061 = vmatpush.bf16.msra.mxu0 0
        %1062 = vmatpush.bf16.msra.mxu0 0
        %1063 = vmatpush.bf16.msra.mxu0 %v1054
        %1064 = vmatmul.bf16.gmra.mxu0 %v1051
        %v1065 = vpop.f32.mrf.mxu0
        %v1066 = vadd.f32 0.0, %v1065
        %v1067 = vpop.f32.mrf.mxu0
        %1068 = vdwg.mxu0
        %v1069 = vpack.c.bf16 %v1066, %v1066
        %1070 = vst.msk [vmem:[#allocation4 + $0x4] sm:$0xf] %vm933, %v1069
        %v1071 = vld [vmem:[#allocation3 + $0x4] sm:$0xf]
        %v1073 = vunpack.c.l.b16 %v1071
        %v1074 = vpack.c.b16 %v1073, %v1073
        %1075 = vrot.lane.b32.xlu0 %v1074, 112
        %v1076 = vpop.permute.xlu0 %1075
        %1077 = vrot.lane.b32.xlu0 %v1074, 80
        %v1078 = vpop.permute.xlu0 %1077
        %v1080 = vsel %vm872, %v1076, 0
        %v1083 = vsel %vm872, %v1078, 0
        %1085 = vmatpush.bf16.xpose.msra.mxu0 0
        %1086 = vmatpush.bf16.xpose.msra.mxu0 0
        %1087 = vmatpush.bf16.xpose.msra.mxu0 0
        %1088 = vmatpush.bf16.xpose.msra.mxu0 0
        %1089 = vmatpush.bf16.xpose.msra.mxu0 0
        %1090 = vmatpush.bf16.xpose.msra.mxu0 0
        %1091 = vmatpush.bf16.xpose.msra.mxu0 0
        %1092 = vmatpush.bf16.xpose.msra.mxu0 %v1083
        %1093 = vmatmul.bf16.gmra.mxu0 %v1080
        %v1094 = vpop.f32.mrf.mxu0
        %v1095 = vadd.f32 0.0, %v1094
        %v1096 = vpop.f32.mrf.mxu0
        %1097 = vdwg.mxu0
        %v1098 = vmul.f32 %v1095, 0.25
        %v1099 = vadd.f32 %v1098, %v1033
        %v1100 = vsel %vm897, %v1099, -inf
        %1101 = vmax.xlane.f32.xlu0 %v1100
        %v1102 = vpop.xlane.xlu0 %1101
        %v1103 = vsub.f32 %v1099, %v1102
        %v1104 = vmul.f32 %v1103, 1.442695
        %v1105 = vpow.pop %v1104
        %v1106 = vsel %vm897, %v1105, 0.0
        %1107 = vadd.xlane.f32.xlu0 %v1106
        %v1108 = vpop.xlane.xlu0 %1107
        %v1109 = vrcp.pop %v1108
        %v1110 = vmul.f32 %v1105, %v1109
        %v1111 = vpack.c.bf16 %v1110, %v1110
        %1112 = vrot.lane.b32.xlu0 %v1074, 48
        %v1113 = vpop.permute.xlu0 %1112
        %v1115 = vsel %vm897, %v1111, 0
        %v1118 = vsel %vm915, %v1113, 0
        %1120 = vmatpush.bf16.msra.mxu0 0
        %1121 = vmatpush.bf16.msra.mxu0 0
        %1122 = vmatpush.bf16.msra.mxu0 0
        %1123 = vmatpush.bf16.msra.mxu0 0
        %1124 = vmatpush.bf16.msra.mxu0 0
        %1125 = vmatpush.bf16.msra.mxu0 0
        %1126 = vmatpush.bf16.msra.mxu0 0
        %1127 = vmatpush.bf16.msra.mxu0 %v1118
        %1128 = vmatmul.bf16.gmra.mxu0 %v1115
        %v1129 = vpop.f32.mrf.mxu0
        %v1130 = vadd.f32 0.0, %v1129
        %v1131 = vpop.f32.mrf.mxu0
        %1132 = vdwg.mxu0
        %v1133 = vpack.c.bf16 %v1130, %v1130
        %1135 = vrot.lane.b32.xlu0 %v1133, 16
        %v1136 = vpop.permute.xlu0 %1135
        %1138 = vst.msk [vmem:[#allocation4 + $0x4] sm:$0xf] %vm1002, %v1136
        %v1139 = vld [vmem:[#allocation4] sm:$0xf]
        %v1140 = vld [vmem:[#allocation4 + $0x4] sm:$0xf]
        %v1141 = vld [vmem:[%s713] sm:$0xf]
        %v1142 = vld [vmem:[%s713 + $0x4] sm:$0xf]
        %v1143 = vld [vmem:[%s713 + $0x8] sm:$0xf]
        %v1144 = vld [vmem:[%s713 + $0xc] sm:$0xf]
        %v1145 = vld [vmem:[%s716] sm:$0x1]
        %v1147 = vperm.slane %v1145, 0
        %v1151 = vunpack.c.l.b16 %v1139
        %v1152 = vunpack.c.l.b16 %v1140
        %v1153 = vpack.c.b16 %v1152, %v1151
        %v1158 = vunpack.c.l.b16 %v1141
        %v1159 = vunpack.c.l.b16 %v1142
        %v1160 = vunpack.c.l.b16 %v1143
        %v1161 = vunpack.c.l.b16 %v1144
        %v1162 = vpack.c.b16 %v1159, %v1158
        %v1163 = vpack.c.b16 %v1161, %v1160
        %v1167 = vsel %vm842, %v1153, 0
        %1169 = vmatpush.bf16.msra.mxu0 0
        %1170 = vmatpush.bf16.msra.mxu0 0
        %1171 = vmatpush.bf16.msra.mxu0 0
        %1172 = vmatpush.bf16.msra.mxu0 0
        %1173 = vmatpush.bf16.msra.mxu0 0
        %1174 = vmatpush.bf16.msra.mxu0 0
        %1175 = vmatpush.bf16.msra.mxu0 %v1163
        %1176 = vmatpush.bf16.msra.mxu0 %v1162
        %1177 = vmatmul.bf16.gmra.mxu0 %v1167
        %v1178 = vpop.f32.mrf.mxu0
        %v1179 = vadd.f32 %v1147, %v1178
        %v1180 = vpop.f32.mrf.mxu0
        %v1181 = vadd.f32 %v1147, %v1180
        %1182 = vdwg.mxu0
        %v1183 = vadd.f32 %v1179, %v819
        %v1184 = vadd.f32 %v1181, %v820
        %v1185 = vld [vmem:[%s719] sm:$0x1]
        %v1186 = vld [vmem:[%s722] sm:$0x1]
        %v1187 = vsel %vm842, %v1183, 0.0
        %1188 = vadd.xlane.f32.xlu0 %v1187
        %v1189 = vpop.xlane.xlu0 %1188
        %v1190 = vsel %vm842, %v1184, 0.0
        %1191 = vadd.xlane.f32.xlu0 %v1190
        %v1192 = vpop.xlane.xlu0 %1191
        %v1193 = vrcp.pop 32.0
        %v1194 = vmul.f32 32.0, %v1193
        %v1195 = vsub.f32 1.0, %v1194
        %v1196 = vmul.f32 %v1193, %v1195
        %v1197 = vadd.f32 %v1193, %v1196
        %vm1198 = vweird.f32 %v1193
        %v1199 = vsel %vm1198, %v1193, %v1197
        %v1200 = vmul.f32 %v1189, %v1199
        %v1201 = vmul.f32 %v1192, %v1199
        %v1202 = vsub.f32 %v1183, %v1200
        %v1203 = vsub.f32 %v1184, %v1201
        %v1204 = vmul.f32 %v1202, %v1202
        %v1205 = vmul.f32 %v1203, %v1203
        %v1206 = vsel %vm842, %v1204, 0.0
        %1207 = vadd.xlane.f32.xlu0 %v1206
        %v1208 = vpop.xlane.xlu0 %1207
        %v1209 = vsel %vm842, %v1205, 0.0
        %1210 = vadd.xlane.f32.xlu0 %v1209
        %v1211 = vpop.xlane.xlu0 %1210
        %v1212 = vmul.f32 %v1208, %v1199
        %v1213 = vmul.f32 %v1211, %v1199
        %v1214 = vadd.f32 %v1212, 1e-05
        %v1215 = vadd.f32 %v1213, 1e-05
        %v1216 = vrsqrt.pop %v1214
        %v1217 = vmul.f32 %v1216, %v1214
        %v1218 = vmul.f32 %v1217, %v1216
        %v1219 = vmul.f32 0.5, %v1218
        %v1220 = vsub.f32 1.5, %v1219
        %v1221 = vmul.f32 %v1216, %v1220
        %vm1222 = vweird.f32 %v1214
        %vm1223 = vweird.f32 %v1216
        %vm1224 = vmor %vm1222, %vm1223
        %v1225 = vsel %vm1224, %v1216, %v1221
        %v1226 = vrsqrt.pop %v1215
        %v1227 = vmul.f32 %v1226, %v1215
        %v1228 = vmul.f32 %v1227, %v1226
        %v1229 = vmul.f32 0.5, %v1228
        %v1230 = vsub.f32 1.5, %v1229
        %v1231 = vmul.f32 %v1226, %v1230
        %vm1232 = vweird.f32 %v1215
        %vm1233 = vweird.f32 %v1226
        %vm1234 = vmor %vm1232, %vm1233
        %v1235 = vsel %vm1234, %v1226, %v1231
        %v1236 = vmul.f32 %v1202, %v1225
        %v1237 = vmul.f32 %v1203, %v1235
        %v1239 = vperm.slane %v1185, 0
        %v1241 = vmul.f32 %v1236, %v1239
        %v1242 = vmul.f32 %v1237, %v1239
        %v1244 = vperm.slane %v1186, 0
        %v1246 = vadd.f32 %v1241, %v1244
        %v1247 = vadd.f32 %v1242, %v1244
        %v1248 = vpack.c.bf16 %v1247, %v1246
        %v1249 = vld [vmem:[%s727] sm:$0xf]
        %v1250 = vld [vmem:[%s727 + $0x4] sm:$0xf]
        %v1251 = vld [vmem:[%s727 + $0x8] sm:$0xf]
        %v1252 = vld [vmem:[%s727 + $0xc] sm:$0xf]
        %v1253 = vld [vmem:[%s730] sm:$0x1]
        %v1255 = vperm.slane %v1253, 0
        %v1261 = vunpack.c.l.b16 %v1249
        %v1262 = vunpack.c.l.b16 %v1250
        %v1263 = vunpack.c.l.b16 %v1251
        %v1264 = vunpack.c.l.b16 %v1252
        %v1265 = vpack.c.b16 %v1262, %v1261
        %v1266 = vpack.c.b16 %v1264, %v1263
        %v1270 = vsel %vm842, %v1248, 0
        %1272 = vmatpush.bf16.msra.mxu0 0
        %1273 = vmatpush.bf16.msra.mxu0 0
        %1274 = vmatpush.bf16.msra.mxu0 0
        %1275 = vmatpush.bf16.msra.mxu0 0
        %1276 = vmatpush.bf16.msra.mxu0 0
        %1277 = vmatpush.bf16.msra.mxu0 0
        %1278 = vmatpush.bf16.msra.mxu0 %v1266
        %1279 = vmatpush.bf16.msra.mxu0 %v1265
        %1280 = vmatmul.bf16.gmra.mxu0 %v1270
        %v1281 = vpop.f32.mrf.mxu0
        %v1282 = vadd.f32 %v1255, %v1281
        %v1283 = vpop.f32.mrf.mxu0
        %v1284 = vadd.f32 %v1255, %v1283
        %1285 = vdwg.mxu0
        %v1286 = vmul.f32 %v1282, 0.5
        %v1287 = vmul.f32 %v1284, 0.5
        %v1288 = vmul.f32 %v1282, 0.70710677
        %v1289 = vmul.f32 %v1284, 0.70710677
        %v1290 = vmul.f32 %v1288, %v1288
        %v1291 = vmin.f32 16.0, %v1290
        %v1292 = vmul.f32 %v1291, 2.1237322e-06
        %v1293 = vadd.f32 %v1292, 0.00028619796
        %v1294 = vmul.f32 %v1291, %v1293
        %v1295 = vadd.f32 %v1294, 0.0036580483
        %v1296 = vmul.f32 %v1291, %v1295
        %v1297 = vadd.f32 %v1296, 0.05243302
        %v1298 = vmul.f32 %v1291, %v1297
        %v1299 = vadd.f32 %v1298, 0.18741608
        %v1300 = vmul.f32 %v1291, %v1299
        %v1301 = vadd.f32 %v1300, 1.1283791
        %v1302 = vmul.f32 %v1288, %v1301
        %v1303 = vmul.f32 %v1291, 3.8918573e-05
        %v1304 = vadd.f32 %v1303, 0.001143296
        %v1305 = vmul.f32 %v1291, %v1304
        %v1306 = vadd.f32 %v1305, 0.014752088
        %v1307 = vmul.f32 %v1291, %v1306
        %v1308 = vadd.f32 %v1307, 0.112945676
        %v1309 = vmul.f32 %v1291, %v1308
        %v1310 = vadd.f32 %v1309, 0.4994258
        %v1311 = vmul.f32 %v1291, %v1310
        %v1312 = vadd.f32 %v1311, 1.0
        %v1313 = vrcp.pop %v1312
        %v1314 = vmul.f32 %v1312, %v1313
        %v1315 = vsub.f32 1.0, %v1314
        %v1316 = vmul.f32 %v1313, %v1315
        %v1317 = vadd.f32 %v1313, %v1316
        %vm1318 = vweird.f32 %v1312
        %vm1319 = vweird.f32 %v1313
        %vm1320 = vmor %vm1318, %vm1319
        %v1321 = vsel %vm1320, %v1313, %v1317
        %v1322 = vand.u32 2147483647, %v1312
        %vm1323 = vcmp.eq.f32.partialorder %v1322, 8.507059e+37
        %v1324 = vand.u32 %v1312, 2147483648
        %v1325 = vor.u32 1.1754944e-38, %v1324
        %v1326 = vsel %vm1323, %v1325, %v1321
        %v1327 = vmul.f32 %v1302, %v1326
        %v1328 = vmin.f32 %v1327, 1.0
        %v1329 = vmax.f32 %v1328, -1.0
        %v1330 = vmul.f32 %v1289, %v1289
        %v1331 = vmin.f32 16.0, %v1330
        %v1332 = vmul.f32 %v1331, 2.1237322e-06
        %v1333 = vadd.f32 %v1332, 0.00028619796
        %v1334 = vmul.f32 %v1331, %v1333
        %v1335 = vadd.f32 %v1334, 0.0036580483
        %v1336 = vmul.f32 %v1331, %v1335
        %v1337 = vadd.f32 %v1336, 0.05243302
        %v1338 = vmul.f32 %v1331, %v1337
        %v1339 = vadd.f32 %v1338, 0.18741608
        %v1340 = vmul.f32 %v1331, %v1339
        %v1341 = vadd.f32 %v1340, 1.1283791
        %v1342 = vmul.f32 %v1289, %v1341
        %v1343 = vmul.f32 %v1331, 3.8918573e-05
        %v1344 = vadd.f32 %v1343, 0.001143296
        %v1345 = vmul.f32 %v1331, %v1344
        %v1346 = vadd.f32 %v1345, 0.014752088
        %v1347 = vmul.f32 %v1331, %v1346
        %v1348 = vadd.f32 %v1347, 0.112945676
        %v1349 = vmul.f32 %v1331, %v1348
        %v1350 = vadd.f32 %v1349, 0.4994258
        %v1351 = vmul.f32 %v1331, %v1350
        %v1352 = vadd.f32 %v1351, 1.0
        %v1353 = vrcp.pop %v1352
        %v1354 = vmul.f32 %v1352, %v1353
        %v1355 = vsub.f32 1.0, %v1354
        %v1356 = vmul.f32 %v1353, %v1355
        %v1357 = vadd.f32 %v1353, %v1356
        %vm1358 = vweird.f32 %v1352
        %vm1359 = vweird.f32 %v1353
        %vm1360 = vmor %vm1358, %vm1359
        %v1361 = vsel %vm1360, %v1353, %v1357
        %v1362 = vand.u32 2147483647, %v1352
        %vm1363 = vcmp.eq.f32.partialorder %v1362, 8.507059e+37
        %v1364 = vand.u32 %v1352, 2147483648
        %v1365 = vor.u32 1.1754944e-38, %v1364
        %v1366 = vsel %vm1363, %v1365, %v1361
        %v1367 = vmul.f32 %v1342, %v1366
        %v1368 = vmin.f32 %v1367, 1.0
        %v1369 = vmax.f32 %v1368, -1.0
        %v1370 = vadd.f32 %v1329, 1.0
        %v1371 = vadd.f32 %v1369, 1.0
        %v1372 = vmul.f32 %v1286, %v1370
        %v1373 = vmul.f32 %v1287, %v1371
        %v1374 = vpack.c.bf16 %v1373, %v1372
        %v1375 = vld [vmem:[%s735] sm:$0xf]
        %v1376 = vld [vmem:[%s735 + $0x4] sm:$0xf]
        %v1377 = vld [vmem:[%s735 + $0x8] sm:$0xf]
        %v1378 = vld [vmem:[%s735 + $0xc] sm:$0xf]
        %v1379 = vld [vmem:[%s735 + $0x10] sm:$0xf]
        %v1380 = vld [vmem:[%s735 + $0x14] sm:$0xf]
        %v1381 = vld [vmem:[%s735 + $0x18] sm:$0xf]
        %v1382 = vld [vmem:[%s735 + $0x1c] sm:$0xf]
        %v1383 = vld [vmem:[%s735 + $0x20] sm:$0xf]
        %v1384 = vld [vmem:[%s735 + $0x24] sm:$0xf]
        %v1385 = vld [vmem:[%s735 + $0x28] sm:$0xf]
        %v1386 = vld [vmem:[%s735 + $0x2c] sm:$0xf]
        %v1387 = vld [vmem:[%s735 + $0x30] sm:$0xf]
        %v1388 = vld [vmem:[%s735 + $0x34] sm:$0xf]
        %v1389 = vld [vmem:[%s735 + $0x38] sm:$0xf]
        %v1390 = vld [vmem:[%s735 + $0x3c] sm:$0xf]
        %v1391 = vld [vmem:[%s738] sm:$0x1]
        %v1393 = vperm.slane %v1391, 0
        %v1411 = vunpack.c.l.b16 %v1375
        %v1412 = vunpack.c.l.b16 %v1376
        %v1413 = vunpack.c.l.b16 %v1377
        %v1414 = vunpack.c.l.b16 %v1378
        %v1415 = vunpack.c.l.b16 %v1379
        %v1416 = vunpack.c.l.b16 %v1380
        %v1417 = vunpack.c.l.b16 %v1381
        %v1418 = vunpack.c.l.b16 %v1382
        %v1419 = vunpack.c.l.b16 %v1383
        %v1420 = vunpack.c.l.b16 %v1384
        %v1421 = vunpack.c.l.b16 %v1385
        %v1422 = vunpack.c.l.b16 %v1386
        %v1423 = vunpack.c.l.b16 %v1387
        %v1424 = vunpack.c.l.b16 %v1388
        %v1425 = vunpack.c.l.b16 %v1389
        %v1426 = vunpack.c.l.b16 %v1390
        %v1427 = vpack.c.b16 %v1412, %v1411
        %v1428 = vpack.c.b16 %v1414, %v1413
        %v1429 = vpack.c.b16 %v1416, %v1415
        %v1430 = vpack.c.b16 %v1418, %v1417
        %v1431 = vpack.c.b16 %v1420, %v1419
        %v1432 = vpack.c.b16 %v1422, %v1421
        %v1433 = vpack.c.b16 %v1424, %v1423
        %v1434 = vpack.c.b16 %v1426, %v1425
        %1443 = vmatpush.bf16.msra.mxu0 %v1434
        %1444 = vmatpush.bf16.msra.mxu0 %v1433
        %1445 = vmatpush.bf16.msra.mxu0 %v1432
        %1446 = vmatpush.bf16.msra.mxu0 %v1431
        %1447 = vmatpush.bf16.msra.mxu0 %v1430
        %1448 = vmatpush.bf16.msra.mxu0 %v1429
        %1449 = vmatpush.bf16.msra.mxu0 %v1428
        %1450 = vmatpush.bf16.msra.mxu0 %v1427
        %1451 = vmatmul.bf16.gmra.mxu0 %v1374
        %v1452 = vpop.f32.mrf.mxu0
        %v1453 = vadd.f32 %v1393, %v1452
        %v1454 = vpop.f32.mrf.mxu0
        %v1455 = vadd.f32 %v1393, %v1454
        %1456 = vdwg.mxu0
        %v1457 = vadd.f32 %v1453, %v1246
        %v1458 = vadd.f32 %v1455, %v1247
        %v1459 = vld [vmem:[%s741] sm:$0x1]
        %v1460 = vld [vmem:[%s744] sm:$0x1]
        %v1461 = vsel %vm842, %v1457, 0.0
        %1462 = vadd.xlane.f32.xlu0 %v1461
        %v1463 = vpop.xlane.xlu0 %1462
        %v1464 = vsel %vm842, %v1458, 0.0
        %1465 = vadd.xlane.f32.xlu0 %v1464
        %v1466 = vpop.xlane.xlu0 %1465
        %v1467 = vmul.f32 %v1463, %v1199
        %v1468 = vmul.f32 %v1466, %v1199
        %v1469 = vsub.f32 %v1457, %v1467
        %v1470 = vsub.f32 %v1458, %v1468
        %v1471 = vmul.f32 %v1469, %v1469
        %v1472 = vmul.f32 %v1470, %v1470
        %v1473 = vsel %vm842, %v1471, 0.0
        %1474 = vadd.xlane.f32.xlu0 %v1473
        %v1475 = vpop.xlane.xlu0 %1474
        %v1476 = vsel %vm842, %v1472, 0.0
        %1477 = vadd.xlane.f32.xlu0 %v1476
        %v1478 = vpop.xlane.xlu0 %1477
        %v1479 = vmul.f32 %v1475, %v1199
        %v1480 = vmul.f32 %v1478, %v1199
        %v1481 = vadd.f32 %v1479, 1e-05
        %v1482 = vadd.f32 %v1480, 1e-05
        %v1483 = vrsqrt.pop %v1481
        %v1484 = vmul.f32 %v1483, %v1481
        %v1485 = vmul.f32 %v1484, %v1483
        %v1486 = vmul.f32 0.5, %v1485
        %v1487 = vsub.f32 1.5, %v1486
        %v1488 = vmul.f32 %v1483, %v1487
        %vm1489 = vweird.f32 %v1481
        %vm1490 = vweird.f32 %v1483
        %vm1491 = vmor %vm1489, %vm1490
        %v1492 = vsel %vm1491, %v1483, %v1488
        %v1493 = vrsqrt.pop %v1482
        %v1494 = vmul.f32 %v1493, %v1482
        %v1495 = vmul.f32 %v1494, %v1493
        %v1496 = vmul.f32 0.5, %v1495
        %v1497 = vsub.f32 1.5, %v1496
        %v1498 = vmul.f32 %v1493, %v1497
        %vm1499 = vweird.f32 %v1482
        %vm1500 = vweird.f32 %v1493
        %vm1501 = vmor %vm1499, %vm1500
        %v1502 = vsel %vm1501, %v1493, %v1498
        %v1503 = vmul.f32 %v1469, %v1492
        %v1504 = vmul.f32 %v1470, %v1502
        %v1506 = vperm.slane %v1459, 0
        %v1508 = vmul.f32 %v1503, %v1506
        %v1509 = vmul.f32 %v1504, %v1506
        %v1511 = vperm.slane %v1460, 0
        %v1513 = vadd.f32 %v1508, %v1511
        %v1514 = vadd.f32 %v1509, %v1511
        %1515 = vst.msk [vmem:[#allocation2] sm:$0xff] %vm842, %v1513
        %1516 = vst.msk [vmem:[#allocation2 + $0x8] sm:$0xff] %vm842, %v1514
        %p1517 = scmp.eq.s32.totalorder %s35, 1
        // Predicated region
        $region89: #{_lambda_.1} parent=83 // pred_check
          %p1518 = pneg %p1517
        $region90: #{_lambda_.1} parent=83 // pred_check_branch
          %1520 = sbr.rel (%p1518) target = $region92
        $region91: #{_lambda_.1} parent=83 // pred_region
          %vm1521 = vcmask 253952
          %1522 = vst.msk [vmem:[%s689] sm:$0x1] %vm1521, %v1513
          %1523 = vst.msk [vmem:[%s689 + $0x1] sm:$0x1] %vm1521, %v1514
        $region92: #{_lambda_.1} parent=83 // pred_fallthru
          _
        %s1524 = sand.u32 %s456, 1
        %s1525 = scalar_lea.sflag [#allocation6], %s1524
        %s1526 = sand.u32 %s456, 1
        %s1527 = smul.addr %s1526, 2
        %s1528 = scalar_lea.vmem [#allocation5], %s1527
        // Predicated region
        $region93: #{_lambda_.1} parent=83 // pred_check
          %p1529 = pneg %p466
        $region94: #{_lambda_.1} parent=83 // pred_check_branch
          %1531 = sbr.rel (%p1529) target = $region96
        $region95: #{_lambda_.1} parent=83 // pred_region
          %s1532 = smul.u32 2, %s34
          %1534 = vsyncadd %s1525, 0
          %s1535 = scalar_lea.hbm %s16, %s1532
          %s1536 = sshll.u32 %s1528, 4
          %s1537 = int_to_ptr.vmem [resolvable:$true] %s1536
          %s1538 = sshll.u32 %s1535, 4
          %s1539 = int_to_ptr.hbm [resolvable:$true] %s1538
          %1544 = dma.vmem_to_hbm [thread:$0]  %s1537, 32, %s1539, %s1525, 16, 16, 1
        $region96: #{_lambda_.1} parent=83 // pred_fallthru
          _
      $region84: #{_lambda_.1} parent=5 // pred_fallthru
        _
      %p1545 = scmp.le.s32.totalorder 2, %s25
      // Predicated region
      $region97: #{_lambda_.1} parent=5 // pred_check
        %p1546 = pneg %p1545
      $region98: #{_lambda_.1} parent=5 // pred_check_branch
        %1548 = sbr.rel (%p1546) target = $region100
      $region99: #{_lambda_.1} parent=5 // pred_region
        %s1549 = ssub.s32 %s25, 2
        // Predicated region
        $region101: #{_lambda_.1} parent=99 // pred_check
          %p1550 = pneg %p472
        $region102: #{_lambda_.1} parent=99 // pred_check_branch
          %1552 = sbr.rel (%p1550) target = $region104
        $region103: #{_lambda_.1} parent=99 // pred_region
          %s1553 = sand.u32 %s457, 1
          %s1554 = scalar_lea.sflag [#allocation6], %s1553
          %s1555 = sand.u32 %s457, 1
          %s1556 = smul.addr %s1555, 2
          %s1557 = scalar_lea.vmem [#allocation5], %s1556
          %1559 = dma.done %s1554, 32
        $region104: #{_lambda_.1} parent=99 // pred_fallthru
          _
      $region100: #{_lambda_.1} parent=5 // pred_fallthru
        _
    $region6: #{_lambda_.1} parent=1 // loop_footer
      %s29 = sadd.s32 1, %s25
    $region7: #{_lambda_.1} parent=1 // loop_footer_branch
      %24 = sbr.rel target = $region3
    $region8: #{_lambda_.1} parent=1 // loop_exit
      _
    %1560 = vsyncpa [#allocation6], 1
    %s1561 = scalar_lea.sflag [#allocation6], 1
    %1562 = vsyncpa %s1561, 1

</llo_original>
